<compile_context>
chip_gen: v7x
topology: tpu7x:2x2x1
jax: 0.10.0
libtpu: 0.0.40
codegen_flags: <defaults>
</compile_context>

<pallas_src>
import math
from functools import partial

import numpy as np
import jax
import jax.numpy as jnp
from jax import lax
from jax.experimental import pallas as pl
from jax.experimental.pallas import tpu as pltpu

LANE = 128

_LAYER_KEYS = ('ln1_w', 'ln1_b', 'wqkv', 'bqkv', 'wo', 'bo',
               'ln2_w', 'ln2_b', 'fc1_w', 'fc1_b', 'fc2_w', 'fc2_b')


def _round_up(n, m):
    return ((n + m - 1) // m) * m


# ---------------------------------------------------------------------------
# math helpers (pure jnp/lax; used inside the kernel and by the reference)
# ---------------------------------------------------------------------------
def _layernorm_padded(x, w, b, d_true, eps=1e-6):
    """LayerNorm over the last dim where only the first `d_true` channels are real.
    Padded tail channels of `x` are exactly zero and w/b are zero-padded, so the
    mean/var can be corrected analytically.  Reduces to plain LN when no padding."""
    d_pad = x.shape[-1] - d_true
    mu = jnp.sum(x, axis=-1, keepdims=True) / d_true
    sq = jnp.sum((x - mu) ** 2, axis=-1, keepdims=True)
    if d_pad:
        sq = sq - d_pad * (mu * mu)
    var = sq / d_true
    return (x - mu) * lax.rsqrt(var + eps) * w + b


def _erf_approx(x):
    # Abramowitz & Stegun 7.1.26, |err| <= 1.5e-7.  Uses only exp / mul / add / div
    # (all guaranteed to lower in Mosaic) instead of relying on an erf primitive.
    a1, a2, a3, a4, a5 = 0.254829592, -0.284496736, 1.421413741, -1.453152027, 1.061405429
    p = 0.3275911
    sgn = jnp.where(x >= 0.0, 1.0, -1.0)
    ax = jnp.abs(x)
    t = 1.0 / (1.0 + p * ax)
    poly = ((((a5 * t + a4) * t + a3) * t + a2) * t + a1) * t
    return sgn * (1.0 - poly * jnp.exp(-ax * ax))


def _gelu_exact_kernel(x):
    # nn.GELU default (approximate='none'): 0.5*x*(1+erf(x/sqrt(2)))
    return 0.5 * x * (1.0 + _erf_approx(x * (1.0 / math.sqrt(2.0))))


# ---------------------------------------------------------------------------
# fused encoder-block kernel
# ---------------------------------------------------------------------------
def encoder_block_kernel(x_ref, *refs, num_heads, d_true, first, last):
    refs = list(refs)
    o_ref = refs.pop()                       # output ref is last
    i = 0
    if first:
        pos_ref = refs[i]
        i += 1
    (ln1_w, ln1_b, wqkv, bqkv, wo, bo,
     ln2_w, ln2_b, fc1_w, fc1_b, fc2_w, fc2_b) = refs[i:i + 12]
    i += 12
    if last:
        lnf_w, lnf_b = refs[i], refs[i + 1]

    f32, bf16 = jnp.float32, jnp.bfloat16

    x = x_ref[...]                           # (Bt, S, Dp) f32
    if first:
        x = x + pos_ref[...]                 # fused positional-embedding add
    Bt, S, Dp = x.shape
    H = num_heads
    D = d_true
    Dh = D // H
    N = Bt * S

    x2d = x.reshape(N, Dp)

    # ---- ln_1 -> fused full-width QKV projection ----
    xln = _layernorm_padded(x2d, ln1_w[...], ln1_b[...], D)
    qkv = jnp.dot(xln.astype(bf16), wqkv[...],
                  preferred_element_type=f32) + bqkv[...]      # (N, 3*Dp) f32
    qkv = qkv.reshape(Bt, S, 3 * Dp)

    # ---- per-head attention (scores batched per image; scale folded into wq/bq) ----
    ctx_heads = []
    for h in range(H):
        q = qkv[:, :, h * Dh:(h + 1) * Dh].astype(bf16)                    # (Bt,S,Dh)
        k = qkv[:, :, Dp + h * Dh:Dp + (h + 1) * Dh].astype(bf16)
        v = qkv[:, :, 2 * Dp + h * Dh:2 * Dp + (h + 1) * Dh].astype(bf16)
        s = jnp.einsum('bqe,bke->bqk', q, k, preferred_element_type=f32)   # (Bt,S,S)
        s = s - jnp.max(s, axis=-1, keepdims=True)
        p = jnp.exp(s)
        l = jnp.sum(p, axis=-1, keepdims=True)
        ctx = jnp.einsum('bqk,bke->bqe', p.astype(bf16), v,
                         preferred_element_type=f32)                       # (Bt,S,Dh)
        # normalise AFTER the PV matmul: (Bt,S,Dh) muls instead of (Bt,S,S)
        ctx_heads.append(ctx * pl.reciprocal(l, approx=True))

    # ---- output projection: one MXU contraction over H*Dh ----
    ctx2d = jnp.concatenate(ctx_heads, axis=-1).reshape(N, D)              # (N, H*Dh)
    attn = jnp.dot(ctx2d.astype(bf16), wo[...],
                   preferred_element_type=f32) + bo[...]                   # (N, Dp)
    x1 = x2d + attn                                                        # dropout == id

    # ---- ln_2 -> MLP (Linear -> GELU(exact) -> Linear) -> +res ----
    y = _layernorm_padded(x1, ln2_w[...], ln2_b[...], D)
    h1 = jnp.dot(y.astype(bf16), fc1_w[...],
                 preferred_element_type=f32) + fc1_b[...]
    h1 = _gelu_exact_kernel(h1)
    y2 = jnp.dot(h1.astype(bf16), fc2_w[...],
                 preferred_element_type=f32) + fc2_b[...]
    out = x1 + y2

    if last:
        out = _layernorm_padded(out, lnf_w[...], lnf_b[...], D)            # fused final LN
    o_ref[...] = out.reshape(Bt, S, Dp).astype(o_ref.dtype)


# ---------------------------------------------------------------------------
# wrappers calling pallas_call
# ---------------------------------------------------------------------------
def _vmem_ceiling_bytes():
    try:
        cap = int(pltpu.get_tpu_info().vmem_capacity_bytes)
    except Exception:
        cap = 64 << 20                      # conservative default (v7x per-core size)
    return (cap * 4) // 5                   # headroom for Mosaic internal scratch


def _pick_batch_tile(B, S, max_rows=256):
    """Largest divisor of B whose row count Bt*S stays within the row target."""
    for cand in range(B, 0, -1):
        if B % cand == 0 and cand * S <= max(max_rows, S):
            return cand
    return 1


def encoder_block(x, lp, num_heads, d_true, *, first, last, pos, lnf_w, lnf_b):
    B, S, Dp = x.shape
    Mp = lp['fc1_w'].shape[1]
    bt = _pick_batch_tile(B, S)
    grid = (B // bt,)

    args = [x]
    in_specs = [pl.BlockSpec((bt, S, Dp), lambda b: (b, 0, 0))]

    # weights / pos: whole-array VMEM residents (single-buffered, no per-step DMA)
    vmem_full = pl.BlockSpec(memory_space=pltpu.MemorySpace.VMEM)
    if first:
        args.append(pos)
        in_specs.append(vmem_full)

    weights = [lp[k] for k in _LAYER_KEYS]
    if last:
        weights += [lnf_w, lnf_b]
    args += weights
    in_specs += [vmem_full] * len(weights)

    # VMEM budget: single-buffered weights + double-buffered activation blocks
    # + f32/bf16 intermediates (qkv / scores / ctx / mlp) + slack.
    wbytes = sum(int(np.prod(w.shape)) * w.dtype.itemsize for w in weights)
    rows = bt * S
    inter = 4 * rows * (3 * Dp + 10 * Dp + 2 * Mp) + 4 * bt * S * S * num_heads
    need = wbytes + 4 * rows * Dp * 4 + inter + (8 << 20)
    vmem_limit = int(min(max(need, 32 << 20), _vmem_ceiling_bytes()))

    flops = 2 * B * S * (Dp * 3 * Dp + 2 * S * d_true + d_true * Dp + 2 * Dp * Mp)
    cost = pl.CostEstimate(
        flops=int(flops),
        transcendentals=int(B * S * (num_heads * S + Mp)),
        bytes_accessed=int(2 * B * S * Dp * 4 + wbytes))

    return pl.pallas_call(
        partial(encoder_block_kernel, num_heads=num_heads, d_true=d_true,
                first=first, last=last),
        out_shape=jax.ShapeDtypeStruct((B, S, Dp), x.dtype),
        grid=grid,
        in_specs=in_specs,
        out_specs=pl.BlockSpec((bt, S, Dp), lambda b: (b, 0, 0)),
        compiler_params=pltpu.CompilerParams(
            dimension_semantics=("parallel",),
            vmem_limit_bytes=vmem_limit),
        cost_estimate=cost,
    )(*args)


def encoder_forward(x, kparams, num_heads):
    B, S, D = x.shape
    Dp = kparams['d_pad']
    xp = x if Dp == D else jnp.zeros((B, S, Dp), x.dtype).at[..., :D].set(x)

    layers = kparams['layers']
    n = len(layers)
    if n == 0:   # degenerate config: pos-add + final LN only
        out = _layernorm_padded(xp + kparams['pos'],
                                kparams['ln_f_w'], kparams['ln_f_b'], D)
        return out[..., :D]

    for i, lp in enumerate(layers):
        xp = encoder_block(xp, lp, num_heads, D,
                           first=(i == 0), last=(i == n - 1),
                           pos=kparams['pos'],
                           lnf_w=kparams['ln_f_w'], lnf_b=kparams['ln_f_b'])
    return xp if Dp == D else xp[..., :D]


# ---------------------------------------------------------------------------
# parameter init (canonical f32, PyTorch-equivalent layout) + kernel packing
# ---------------------------------------------------------------------------
def init_params(key, num_layers, S, D, M):
    keys = jax.random.split(key, 1 + num_layers)
    params = {
        'pos': 0.02 * jax.random.normal(keys[0], (1, S, D), jnp.float32),
        'ln_f_w': jnp.ones((D,), jnp.float32),
        'ln_f_b': jnp.zeros((D,), jnp.float32),
        'layers': [],
    }
    for i in range(num_layers):
        ks = jax.random.split(keys[1 + i], 10)
        params['layers'].append(dict(
            ln1_w=jnp.ones((D,), jnp.float32), ln1_b=jnp.zeros((D,), jnp.float32),
            # (in, out) == PyTorch in_proj_weight.T slices
            wq=0.05 * jax.random.normal(ks[0], (D, D), jnp.float32),
            bq=0.01 * jax.random.normal(ks[1], (D,), jnp.float32),
            wk=0.05 * jax.random.normal(ks[2], (D, D), jnp.float32),
            bk=0.01 * jax.random.normal(ks[3], (D,), jnp.float32),
            wv=0.05 * jax.random.normal(ks[4], (D, D), jnp.float32),
            bv=0.01 * jax.random.normal(ks[5], (D,), jnp.float32),
            wo=0.05 * jax.random.normal(ks[6], (D, D), jnp.float32),
            bo=jnp.zeros((D,), jnp.float32),
            ln2_w=jnp.ones((D,), jnp.float32), ln2_b=jnp.zeros((D,), jnp.float32),
            fc1_w=0.05 * jax.random.normal(ks[7], (D, M), jnp.float32),
            fc1_b=1e-6 * jax.random.normal(ks[8], (M,), jnp.float32),
            fc2_w=0.05 * jax.random.normal(ks[9], (M, D), jnp.float32),
            fc2_b=jnp.zeros((D,), jnp.float32),
        ))
    return params


def pack_params(params, num_heads, lane=LANE):
    """Repack canonical f32 params into the kernel layout:
       - D and M zero-padded to multiples of 128 (lane-dense)
       - Q/K/V fused into one (Dp, 3*Dp) bf16 matrix with 1/sqrt(Dh) folded into the Q part
       - matmul weights bf16 (MXU-native); LayerNorm / bias rows f32 as (1, N)."""
    H = num_heads
    S = params['pos'].shape[1]
    D = params['pos'].shape[2]
    Dh = D // H
    Dp = _round_up(D, lane)
    scale = 1.0 / math.sqrt(Dh)
    bf16, f32 = jnp.bfloat16, jnp.float32

    def pad_mat(w, rows, cols, dtype):
        return jnp.zeros((rows, cols), f32).at[:w.shape[0], :w.shape[1]].set(w).astype(dtype)

    def pad_vec(v, cols):
        return jnp.zeros((1, cols), f32).at[0, :v.shape[0]].set(v.astype(f32))

    packed = {
        'd_pad': Dp,
        'pos': jnp.zeros((1, S, Dp), f32).at[:, :, :D].set(params['pos']),
        'ln_f_w': pad_vec(params['ln_f_w'], Dp),
        'ln_f_b': pad_vec(params['ln_f_b'], Dp),
        'layers': [],
    }
    for p in params['layers']:
        M = p['fc1_w'].shape[1]
        Mp = _round_up(M, lane)
        wqkv = jnp.concatenate([
            pad_mat(p['wq'] * scale, Dp, Dp, f32),
            pad_mat(p['wk'], Dp, Dp, f32),
            pad_mat(p['wv'], Dp, Dp, f32)], axis=1).astype(bf16)       # (Dp, 3*Dp)
        bqkv = jnp.concatenate([
            pad_vec(p['bq'] * scale, Dp),
            pad_vec(p['bk'], Dp),
            pad_vec(p['bv'], Dp)], axis=1)                             # (1, 3*Dp) f32
        packed['layers'].append(dict(
            ln1_w=pad_vec(p['ln1_w'], Dp), ln1_b=pad_vec(p['ln1_b'], Dp),
            wqkv=wqkv, bqkv=bqkv,
            wo=pad_mat(p['wo'], D, Dp, bf16),                          # (H*Dh, Dp)
            bo=pad_vec(p['bo'], Dp),
            ln2_w=pad_vec(p['ln2_w'], Dp), ln2_b=pad_vec(p['ln2_b'], Dp),
            fc1_w=pad_mat(p['fc1_w'], Dp, Mp, bf16), fc1_b=pad_vec(p['fc1_b'], Mp),
            fc2_w=pad_mat(p['fc2_w'], Mp, Dp, bf16), fc2_b=pad_vec(p['fc2_b'], Dp),
        ))
    return packed


# ---------------------------------------------------------------------------
# pure-JAX f32 reference (mirrors the PyTorch forward) for correctness check
# ---------------------------------------------------------------------------
def reference_forward(x, params, num_heads):
    B, S, D = x.shape
    Dh = D // num_heads
    x = x + params['pos']
    for p in params['layers']:
        xln = _layernorm_padded(x, p['ln1_w'], p['ln1_b'], D)
        q = xln @ p['wq'] + p['bq']
        k = xln @ p['wk'] + p['bk']
        v = xln @ p['wv'] + p['bv']

        def split_heads(t):
            return t.reshape(B, S, num_heads, Dh).transpose(0, 2, 1, 3)

        q = split_heads(q) / math.sqrt(Dh)
        k = split_heads(k)
        v = split_heads(v)
        s = jnp.einsum('bhqd,bhkd->bhqk', q, k)
        a = jnp.einsum('bhqk,bhkd->bhqd', jax.nn.softmax(s, axis=-1), v)
        a = a.transpose(0, 2, 1, 3).reshape(B, S, D)
        a = a @ p['wo'] + p['bo']
        x1 = x + a
        y = _layernorm_padded(x1, p['ln2_w'], p['ln2_b'], D)
        h1 = jax.nn.gelu(y @ p['fc1_w'] + p['fc1_b'], approximate=False)
        x = x1 + (h1 @ p['fc2_w'] + p['fc2_b'])
    return _layernorm_padded(x, params['ln_f_w'], params['ln_f_b'], D)


if __name__ == "__main__":
    # shapes consistent with Encoder(seq_length=8, num_layers=2, num_heads=4,
    # hidden_dim=32, mlp_dim=64, dropout=0.0, attention_dropout=0.0)
    B, S, D, H, M, L = 2, 8, 32, 4, 64, 2

    key = jax.random.PRNGKey(0)
    kx, kp = jax.random.split(key)
    x = jax.random.normal(kx, (B, S, D), jnp.float32)
    params = init_params(kp, L, S, D, M)
    kparams = pack_params(params, H)

    out = encoder_forward(x, kparams, H)
    out = jax.block_until_ready(out)

    assert out.shape == (B, S, D)
    assert bool(jnp.all(jnp.isfinite(out)))

    ref = reference_forward(x, params, H)
    np.testing.assert_allclose(np.asarray(out), np.asarray(ref), rtol=5e-2, atol=5e-2)

    print("KERNEL_OK")
</pallas_src>

<mosaic_0001>
module attributes {stable_mosaic.version = 11 : i64} {
  func.func @encoder_block_kernel(%arg0: i32, %arg1: memref<2x8x128xf32, #tpu.memory_space<vmem>>, %arg2: memref<1x8x128xf32, #tpu.memory_space<vmem>>, %arg3: memref<1x128xf32, #tpu.memory_space<vmem>>, %arg4: memref<1x128xf32, #tpu.memory_space<vmem>>, %arg5: memref<128x384xbf16, #tpu.memory_space<vmem>>, %arg6: memref<1x384xf32, #tpu.memory_space<vmem>>, %arg7: memref<32x128xbf16, #tpu.memory_space<vmem>>, %arg8: memref<1x128xf32, #tpu.memory_space<vmem>>, %arg9: memref<1x128xf32, #tpu.memory_space<vmem>>, %arg10: memref<1x128xf32, #tpu.memory_space<vmem>>, %arg11: memref<128x128xbf16, #tpu.memory_space<vmem>>, %arg12: memref<1x128xf32, #tpu.memory_space<vmem>>, %arg13: memref<128x128xbf16, #tpu.memory_space<vmem>>, %arg14: memref<1x128xf32, #tpu.memory_space<vmem>>, %arg15: memref<2x8x128xf32, #tpu.memory_space<vmem>>) attributes {dimension_semantics = [#tpu.dimension_semantics<parallel>], iteration_bounds = array<i64: 1>, scalar_prefetch = 0 : i64, scratch_operands = 0 : i64, tpu.core_type = #tpu.core_type<tc>, window_params = [{transform_indices = @transform_0, window_bounds = array<i64: 2, 8, 128>}, {pipeline_mode = #tpu.pipeline_mode<synchronous>, transform_indices = @transform_1, window_bounds = array<i64: 1, 8, 128>}, {pipeline_mode = #tpu.pipeline_mode<synchronous>, transform_indices = @transform_2, window_bounds = array<i64: 1, 128>}, {pipeline_mode = #tpu.pipeline_mode<synchronous>, transform_indices = @transform_3, window_bounds = array<i64: 1, 128>}, {pipeline_mode = #tpu.pipeline_mode<synchronous>, transform_indices = @transform_4, window_bounds = array<i64: 128, 384>}, {pipeline_mode = #tpu.pipeline_mode<synchronous>, transform_indices = @transform_5, window_bounds = array<i64: 1, 384>}, {pipeline_mode = #tpu.pipeline_mode<synchronous>, transform_indices = @transform_6, window_bounds = array<i64: 32, 128>}, {pipeline_mode = #tpu.pipeline_mode<synchronous>, transform_indices = @transform_7, window_bounds = array<i64: 1, 128>}, {pipeline_mode = #tpu.pipeline_mode<synchronous>, transform_indices = @transform_8, window_bounds = array<i64: 1, 128>}, {pipeline_mode = #tpu.pipeline_mode<synchronous>, transform_indices = @transform_9, window_bounds = array<i64: 1, 128>}, {pipeline_mode = #tpu.pipeline_mode<synchronous>, transform_indices = @transform_10, window_bounds = array<i64: 128, 128>}, {pipeline_mode = #tpu.pipeline_mode<synchronous>, transform_indices = @transform_11, window_bounds = array<i64: 1, 128>}, {pipeline_mode = #tpu.pipeline_mode<synchronous>, transform_indices = @transform_12, window_bounds = array<i64: 128, 128>}, {pipeline_mode = #tpu.pipeline_mode<synchronous>, transform_indices = @transform_13, window_bounds = array<i64: 1, 128>}, {transform_indices = @transform_14, window_bounds = array<i64: 2, 8, 128>}]} {
    %c0 = arith.constant 0 : index
    %c0_0 = arith.constant 0 : index
    %c0_1 = arith.constant 0 : index
    %0 = vector.load %arg1[%c0, %c0_0, %c0_1] : memref<2x8x128xf32, #tpu.memory_space<vmem>>, vector<2x8x128xf32>
    %c0_2 = arith.constant 0 : index
    %c0_3 = arith.constant 0 : index
    %c0_4 = arith.constant 0 : index
    %1 = vector.load %arg2[%c0_2, %c0_3, %c0_4] : memref<1x8x128xf32, #tpu.memory_space<vmem>>, vector<1x8x128xf32>
    %2 = vector.broadcast %1 : vector<1x8x128xf32> to vector<2x8x128xf32>
    %3 = arith.addf %0, %2 : vector<2x8x128xf32>
    %4 = vector.shape_cast %3 : vector<2x8x128xf32> to vector<16x128xf32>
    %c0_5 = arith.constant 0 : index
    %c0_6 = arith.constant 0 : index
    %5 = vector.load %arg3[%c0_5, %c0_6] : memref<1x128xf32, #tpu.memory_space<vmem>>, vector<1x128xf32>
    %c0_7 = arith.constant 0 : index
    %c0_8 = arith.constant 0 : index
    %6 = vector.load %arg4[%c0_7, %c0_8] : memref<1x128xf32, #tpu.memory_space<vmem>>, vector<1x128xf32>
    %cst = arith.constant dense<0.000000e+00> : vector<16xf32>
    %7 = vector.multi_reduction <add>, %4, %cst [1] : vector<16x128xf32> to vector<16xf32>
    %8 = vector.shape_cast %7 : vector<16xf32> to vector<16x1xf32>
    %cst_9 = arith.constant 3.200000e+01 : f32
    %9 = vector.broadcast %cst_9 : f32 to vector<16x1xf32>
    %10 = arith.divf %8, %9 : vector<16x1xf32>
    %11 = vector.broadcast %10 : vector<16x1xf32> to vector<16x128xf32>
    %12 = arith.subf %4, %11 : vector<16x128xf32>
    %13 = arith.mulf %12, %12 : vector<16x128xf32>
    %cst_10 = arith.constant dense<0.000000e+00> : vector<16xf32>
    %14 = vector.multi_reduction <add>, %13, %cst_10 [1] : vector<16x128xf32> to vector<16xf32>
    %15 = vector.shape_cast %14 : vector<16xf32> to vector<16x1xf32>
    %16 = arith.mulf %10, %10 : vector<16x1xf32>
    %cst_11 = arith.constant 9.600000e+01 : f32
    %17 = vector.broadcast %cst_11 : f32 to vector<16x1xf32>
    %18 = arith.mulf %17, %16 : vector<16x1xf32>
    %19 = arith.subf %15, %18 : vector<16x1xf32>
    %cst_12 = arith.constant 3.200000e+01 : f32
    %20 = vector.broadcast %cst_12 : f32 to vector<16x1xf32>
    %21 = arith.divf %19, %20 : vector<16x1xf32>
    %22 = vector.broadcast %10 : vector<16x1xf32> to vector<16x128xf32>
    %23 = arith.subf %4, %22 : vector<16x128xf32>
    %cst_13 = arith.constant 9.99999997E-7 : f32
    %24 = vector.broadcast %cst_13 : f32 to vector<16x1xf32>
    %25 = arith.addf %21, %24 : vector<16x1xf32>
    %26 = math.rsqrt %25 : vector<16x1xf32>
    %27 = vector.broadcast %26 : vector<16x1xf32> to vector<16x128xf32>
    %28 = arith.mulf %23, %27 : vector<16x128xf32>
    %29 = vector.broadcast %5 : vector<1x128xf32> to vector<16x128xf32>
    %30 = arith.mulf %28, %29 : vector<16x128xf32>
    %31 = vector.broadcast %6 : vector<1x128xf32> to vector<16x128xf32>
    %32 = arith.addf %30, %31 : vector<16x128xf32>
    %33 = arith.truncf %32 : vector<16x128xf32> to vector<16x128xbf16>
    %c0_14 = arith.constant 0 : index
    %c0_15 = arith.constant 0 : index
    %34 = vector.load %arg5[%c0_14, %c0_15] : memref<128x384xbf16, #tpu.memory_space<vmem>>, vector<128x384xbf16>
    %cst_16 = arith.constant dense<0.000000e+00> : vector<16x384xf32>
    %35 = tpu.matmul %33, %34, %cst_16 {dimension_numbers = #tpu.dot_dimension_numbers<[1], [0], [0], [1], [0, 0, 1, 1], [], []>} : vector<16x128xbf16>, vector<128x384xbf16>, vector<16x384xf32> -> vector<16x384xf32>
    %c0_17 = arith.constant 0 : index
    %c0_18 = arith.constant 0 : index
    %36 = vector.load %arg6[%c0_17, %c0_18] : memref<1x384xf32, #tpu.memory_space<vmem>>, vector<1x384xf32>
    %37 = vector.broadcast %36 : vector<1x384xf32> to vector<16x384xf32>
    %38 = arith.addf %35, %37 : vector<16x384xf32>
    %39 = vector.shape_cast %38 : vector<16x384xf32> to vector<2x8x384xf32>
    %40 = vector.extract_strided_slice %39 {offsets = [0, 0, 0], sizes = [2, 8, 8], strides = [1, 1, 1]} : vector<2x8x384xf32> to vector<2x8x8xf32>
    %41 = arith.truncf %40 : vector<2x8x8xf32> to vector<2x8x8xbf16>
    %42 = vector.extract_strided_slice %39 {offsets = [0, 0, 128], sizes = [2, 8, 8], strides = [1, 1, 1]} : vector<2x8x384xf32> to vector<2x8x8xf32>
    %43 = arith.truncf %42 : vector<2x8x8xf32> to vector<2x8x8xbf16>
    %44 = vector.extract_strided_slice %39 {offsets = [0, 0, 256], sizes = [2, 8, 8], strides = [1, 1, 1]} : vector<2x8x384xf32> to vector<2x8x8xf32>
    %45 = arith.truncf %44 : vector<2x8x8xf32> to vector<2x8x8xbf16>
    "tpu.trace_start"() <{level = 10 : i32, message = "bqe,bke->bqk"}> : () -> ()
    %cst_19 = arith.constant dense<0.000000e+00> : vector<2x8x8xf32>
    %46 = tpu.matmul %41, %43, %cst_19 {dimension_numbers = #tpu.dot_dimension_numbers<[2], [2], [1], [1], [0, 0, 0, 1, 1, 1], [0], [0]>} : vector<2x8x8xbf16>, vector<2x8x8xbf16>, vector<2x8x8xf32> -> vector<2x8x8xf32>
    "tpu.trace_stop"() : () -> ()
    %cst_20 = arith.constant dense<0xFF800000> : vector<2x8xf32>
    %47 = vector.multi_reduction <maximumf>, %46, %cst_20 [2] : vector<2x8x8xf32> to vector<2x8xf32>
    %48 = vector.shape_cast %47 : vector<2x8xf32> to vector<2x8x1xf32>
    %49 = vector.broadcast %48 : vector<2x8x1xf32> to vector<2x8x8xf32>
    %50 = arith.subf %46, %49 : vector<2x8x8xf32>
    %51 = math.exp %50 : vector<2x8x8xf32>
    %cst_21 = arith.constant dense<0.000000e+00> : vector<2x8xf32>
    %52 = vector.multi_reduction <add>, %51, %cst_21 [2] : vector<2x8x8xf32> to vector<2x8xf32>
    %53 = vector.shape_cast %52 : vector<2x8xf32> to vector<2x8x1xf32>
    %54 = arith.truncf %51 : vector<2x8x8xf32> to vector<2x8x8xbf16>
    "tpu.trace_start"() <{level = 10 : i32, message = "bqk,bke->bqe"}> : () -> ()
    %cst_22 = arith.constant dense<0.000000e+00> : vector<2x8x8xf32>
    %55 = tpu.matmul %54, %45, %cst_22 {dimension_numbers = #tpu.dot_dimension_numbers<[2], [1], [1], [2], [0, 0, 0, 1, 1, 2], [0], [0]>} : vector<2x8x8xbf16>, vector<2x8x8xbf16>, vector<2x8x8xf32> -> vector<2x8x8xf32>
    "tpu.trace_stop"() : () -> ()
    %56 = tpu.reciprocal %53 {approx = true} : vector<2x8x1xf32> -> vector<2x8x1xf32>
    %57 = vector.broadcast %56 : vector<2x8x1xf32> to vector<2x8x8xf32>
    %58 = arith.mulf %55, %57 : vector<2x8x8xf32>
    %59 = vector.extract_strided_slice %39 {offsets = [0, 0, 8], sizes = [2, 8, 8], strides = [1, 1, 1]} : vector<2x8x384xf32> to vector<2x8x8xf32>
    %60 = arith.truncf %59 : vector<2x8x8xf32> to vector<2x8x8xbf16>
    %61 = vector.extract_strided_slice %39 {offsets = [0, 0, 136], sizes = [2, 8, 8], strides = [1, 1, 1]} : vector<2x8x384xf32> to vector<2x8x8xf32>
    %62 = arith.truncf %61 : vector<2x8x8xf32> to vector<2x8x8xbf16>
    %63 = vector.extract_strided_slice %39 {offsets = [0, 0, 264], sizes = [2, 8, 8], strides = [1, 1, 1]} : vector<2x8x384xf32> to vector<2x8x8xf32>
    %64 = arith.truncf %63 : vector<2x8x8xf32> to vector<2x8x8xbf16>
    "tpu.trace_start"() <{level = 10 : i32, message = "bqe,bke->bqk"}> : () -> ()
    %cst_23 = arith.constant dense<0.000000e+00> : vector<2x8x8xf32>
    %65 = tpu.matmul %60, %62, %cst_23 {dimension_numbers = #tpu.dot_dimension_numbers<[2], [2], [1], [1], [0, 0, 0, 1, 1, 1], [0], [0]>} : vector<2x8x8xbf16>, vector<2x8x8xbf16>, vector<2x8x8xf32> -> vector<2x8x8xf32>
    "tpu.trace_stop"() : () -> ()
    %cst_24 = arith.constant dense<0xFF800000> : vector<2x8xf32>
    %66 = vector.multi_reduction <maximumf>, %65, %cst_24 [2] : vector<2x8x8xf32> to vector<2x8xf32>
    %67 = vector.shape_cast %66 : vector<2x8xf32> to vector<2x8x1xf32>
    %68 = vector.broadcast %67 : vector<2x8x1xf32> to vector<2x8x8xf32>
    %69 = arith.subf %65, %68 : vector<2x8x8xf32>
    %70 = math.exp %69 : vector<2x8x8xf32>
    %cst_25 = arith.constant dense<0.000000e+00> : vector<2x8xf32>
    %71 = vector.multi_reduction <add>, %70, %cst_25 [2] : vector<2x8x8xf32> to vector<2x8xf32>
    %72 = vector.shape_cast %71 : vector<2x8xf32> to vector<2x8x1xf32>
    %73 = arith.truncf %70 : vector<2x8x8xf32> to vector<2x8x8xbf16>
    "tpu.trace_start"() <{level = 10 : i32, message = "bqk,bke->bqe"}> : () -> ()
    %cst_26 = arith.constant dense<0.000000e+00> : vector<2x8x8xf32>
    %74 = tpu.matmul %73, %64, %cst_26 {dimension_numbers = #tpu.dot_dimension_numbers<[2], [1], [1], [2], [0, 0, 0, 1, 1, 2], [0], [0]>} : vector<2x8x8xbf16>, vector<2x8x8xbf16>, vector<2x8x8xf32> -> vector<2x8x8xf32>
    "tpu.trace_stop"() : () -> ()
    %75 = tpu.reciprocal %72 {approx = true} : vector<2x8x1xf32> -> vector<2x8x1xf32>
    %76 = vector.broadcast %75 : vector<2x8x1xf32> to vector<2x8x8xf32>
    %77 = arith.mulf %74, %76 : vector<2x8x8xf32>
    %78 = vector.extract_strided_slice %39 {offsets = [0, 0, 16], sizes = [2, 8, 8], strides = [1, 1, 1]} : vector<2x8x384xf32> to vector<2x8x8xf32>
    %79 = arith.truncf %78 : vector<2x8x8xf32> to vector<2x8x8xbf16>
    %80 = vector.extract_strided_slice %39 {offsets = [0, 0, 144], sizes = [2, 8, 8], strides = [1, 1, 1]} : vector<2x8x384xf32> to vector<2x8x8xf32>
    %81 = arith.truncf %80 : vector<2x8x8xf32> to vector<2x8x8xbf16>
    %82 = vector.extract_strided_slice %39 {offsets = [0, 0, 272], sizes = [2, 8, 8], strides = [1, 1, 1]} : vector<2x8x384xf32> to vector<2x8x8xf32>
    %83 = arith.truncf %82 : vector<2x8x8xf32> to vector<2x8x8xbf16>
    "tpu.trace_start"() <{level = 10 : i32, message = "bqe,bke->bqk"}> : () -> ()
    %cst_27 = arith.constant dense<0.000000e+00> : vector<2x8x8xf32>
    %84 = tpu.matmul %79, %81, %cst_27 {dimension_numbers = #tpu.dot_dimension_numbers<[2], [2], [1], [1], [0, 0, 0, 1, 1, 1], [0], [0]>} : vector<2x8x8xbf16>, vector<2x8x8xbf16>, vector<2x8x8xf32> -> vector<2x8x8xf32>
    "tpu.trace_stop"() : () -> ()
    %cst_28 = arith.constant dense<0xFF800000> : vector<2x8xf32>
    %85 = vector.multi_reduction <maximumf>, %84, %cst_28 [2] : vector<2x8x8xf32> to vector<2x8xf32>
    %86 = vector.shape_cast %85 : vector<2x8xf32> to vector<2x8x1xf32>
    %87 = vector.broadcast %86 : vector<2x8x1xf32> to vector<2x8x8xf32>
    %88 = arith.subf %84, %87 : vector<2x8x8xf32>
    %89 = math.exp %88 : vector<2x8x8xf32>
    %cst_29 = arith.constant dense<0.000000e+00> : vector<2x8xf32>
    %90 = vector.multi_reduction <add>, %89, %cst_29 [2] : vector<2x8x8xf32> to vector<2x8xf32>
    %91 = vector.shape_cast %90 : vector<2x8xf32> to vector<2x8x1xf32>
    %92 = arith.truncf %89 : vector<2x8x8xf32> to vector<2x8x8xbf16>
    "tpu.trace_start"() <{level = 10 : i32, message = "bqk,bke->bqe"}> : () -> ()
    %cst_30 = arith.constant dense<0.000000e+00> : vector<2x8x8xf32>
    %93 = tpu.matmul %92, %83, %cst_30 {dimension_numbers = #tpu.dot_dimension_numbers<[2], [1], [1], [2], [0, 0, 0, 1, 1, 2], [0], [0]>} : vector<2x8x8xbf16>, vector<2x8x8xbf16>, vector<2x8x8xf32> -> vector<2x8x8xf32>
    "tpu.trace_stop"() : () -> ()
    %94 = tpu.reciprocal %91 {approx = true} : vector<2x8x1xf32> -> vector<2x8x1xf32>
    %95 = vector.broadcast %94 : vector<2x8x1xf32> to vector<2x8x8xf32>
    %96 = arith.mulf %93, %95 : vector<2x8x8xf32>
    %97 = vector.extract_strided_slice %39 {offsets = [0, 0, 24], sizes = [2, 8, 8], strides = [1, 1, 1]} : vector<2x8x384xf32> to vector<2x8x8xf32>
    %98 = arith.truncf %97 : vector<2x8x8xf32> to vector<2x8x8xbf16>
    %99 = vector.extract_strided_slice %39 {offsets = [0, 0, 152], sizes = [2, 8, 8], strides = [1, 1, 1]} : vector<2x8x384xf32> to vector<2x8x8xf32>
    %100 = arith.truncf %99 : vector<2x8x8xf32> to vector<2x8x8xbf16>
    %101 = vector.extract_strided_slice %39 {offsets = [0, 0, 280], sizes = [2, 8, 8], strides = [1, 1, 1]} : vector<2x8x384xf32> to vector<2x8x8xf32>
    %102 = arith.truncf %101 : vector<2x8x8xf32> to vector<2x8x8xbf16>
    "tpu.trace_start"() <{level = 10 : i32, message = "bqe,bke->bqk"}> : () -> ()
    %cst_31 = arith.constant dense<0.000000e+00> : vector<2x8x8xf32>
    %103 = tpu.matmul %98, %100, %cst_31 {dimension_numbers = #tpu.dot_dimension_numbers<[2], [2], [1], [1], [0, 0, 0, 1, 1, 1], [0], [0]>} : vector<2x8x8xbf16>, vector<2x8x8xbf16>, vector<2x8x8xf32> -> vector<2x8x8xf32>
    "tpu.trace_stop"() : () -> ()
    %cst_32 = arith.constant dense<0xFF800000> : vector<2x8xf32>
    %104 = vector.multi_reduction <maximumf>, %103, %cst_32 [2] : vector<2x8x8xf32> to vector<2x8xf32>
    %105 = vector.shape_cast %104 : vector<2x8xf32> to vector<2x8x1xf32>
    %106 = vector.broadcast %105 : vector<2x8x1xf32> to vector<2x8x8xf32>
    %107 = arith.subf %103, %106 : vector<2x8x8xf32>
    %108 = math.exp %107 : vector<2x8x8xf32>
    %cst_33 = arith.constant dense<0.000000e+00> : vector<2x8xf32>
    %109 = vector.multi_reduction <add>, %108, %cst_33 [2] : vector<2x8x8xf32> to vector<2x8xf32>
    %110 = vector.shape_cast %109 : vector<2x8xf32> to vector<2x8x1xf32>
    %111 = arith.truncf %108 : vector<2x8x8xf32> to vector<2x8x8xbf16>
    "tpu.trace_start"() <{level = 10 : i32, message = "bqk,bke->bqe"}> : () -> ()
    %cst_34 = arith.constant dense<0.000000e+00> : vector<2x8x8xf32>
    %112 = tpu.matmul %111, %102, %cst_34 {dimension_numbers = #tpu.dot_dimension_numbers<[2], [1], [1], [2], [0, 0, 0, 1, 1, 2], [0], [0]>} : vector<2x8x8xbf16>, vector<2x8x8xbf16>, vector<2x8x8xf32> -> vector<2x8x8xf32>
    "tpu.trace_stop"() : () -> ()
    %113 = tpu.reciprocal %110 {approx = true} : vector<2x8x1xf32> -> vector<2x8x1xf32>
    %114 = vector.broadcast %113 : vector<2x8x1xf32> to vector<2x8x8xf32>
    %115 = arith.mulf %112, %114 : vector<2x8x8xf32>
    %116 = tpu.concatenate %58, %77, %96, %115 in 2 : vector<2x8x8xf32>, vector<2x8x8xf32>, vector<2x8x8xf32>, vector<2x8x8xf32> -> vector<2x8x32xf32>
    %117 = vector.shape_cast %116 : vector<2x8x32xf32> to vector<16x32xf32>
    %118 = arith.truncf %117 : vector<16x32xf32> to vector<16x32xbf16>
    %c0_35 = arith.constant 0 : index
    %c0_36 = arith.constant 0 : index
    %119 = vector.load %arg7[%c0_35, %c0_36] : memref<32x128xbf16, #tpu.memory_space<vmem>>, vector<32x128xbf16>
    %cst_37 = arith.constant dense<0.000000e+00> : vector<16x128xf32>
    %120 = tpu.matmul %118, %119, %cst_37 {dimension_numbers = #tpu.dot_dimension_numbers<[1], [0], [0], [1], [0, 0, 1, 1], [], []>} : vector<16x32xbf16>, vector<32x128xbf16>, vector<16x128xf32> -> vector<16x128xf32>
    %c0_38 = arith.constant 0 : index
    %c0_39 = arith.constant 0 : index
    %121 = vector.load %arg8[%c0_38, %c0_39] : memref<1x128xf32, #tpu.memory_space<vmem>>, vector<1x128xf32>
    %122 = vector.broadcast %121 : vector<1x128xf32> to vector<16x128xf32>
    %123 = arith.addf %120, %122 : vector<16x128xf32>
    %124 = arith.addf %4, %123 : vector<16x128xf32>
    %c0_40 = arith.constant 0 : index
    %c0_41 = arith.constant 0 : index
    %125 = vector.load %arg9[%c0_40, %c0_41] : memref<1x128xf32, #tpu.memory_space<vmem>>, vector<1x128xf32>
    %c0_42 = arith.constant 0 : index
    %c0_43 = arith.constant 0 : index
    %126 = vector.load %arg10[%c0_42, %c0_43] : memref<1x128xf32, #tpu.memory_space<vmem>>, vector<1x128xf32>
    %cst_44 = arith.constant dense<0.000000e+00> : vector<16xf32>
    %127 = vector.multi_reduction <add>, %124, %cst_44 [1] : vector<16x128xf32> to vector<16xf32>
    %128 = vector.shape_cast %127 : vector<16xf32> to vector<16x1xf32>
    %cst_45 = arith.constant 3.200000e+01 : f32
    %129 = vector.broadcast %cst_45 : f32 to vector<16x1xf32>
    %130 = arith.divf %128, %129 : vector<16x1xf32>
    %131 = vector.broadcast %130 : vector<16x1xf32> to vector<16x128xf32>
    %132 = arith.subf %124, %131 : vector<16x128xf32>
    %133 = arith.mulf %132, %132 : vector<16x128xf32>
    %cst_46 = arith.constant dense<0.000000e+00> : vector<16xf32>
    %134 = vector.multi_reduction <add>, %133, %cst_46 [1] : vector<16x128xf32> to vector<16xf32>
    %135 = vector.shape_cast %134 : vector<16xf32> to vector<16x1xf32>
    %136 = arith.mulf %130, %130 : vector<16x1xf32>
    %cst_47 = arith.constant 9.600000e+01 : f32
    %137 = vector.broadcast %cst_47 : f32 to vector<16x1xf32>
    %138 = arith.mulf %137, %136 : vector<16x1xf32>
    %139 = arith.subf %135, %138 : vector<16x1xf32>
    %cst_48 = arith.constant 3.200000e+01 : f32
    %140 = vector.broadcast %cst_48 : f32 to vector<16x1xf32>
    %141 = arith.divf %139, %140 : vector<16x1xf32>
    %142 = vector.broadcast %130 : vector<16x1xf32> to vector<16x128xf32>
    %143 = arith.subf %124, %142 : vector<16x128xf32>
    %cst_49 = arith.constant 9.99999997E-7 : f32
    %144 = vector.broadcast %cst_49 : f32 to vector<16x1xf32>
    %145 = arith.addf %141, %144 : vector<16x1xf32>
    %146 = math.rsqrt %145 : vector<16x1xf32>
    %147 = vector.broadcast %146 : vector<16x1xf32> to vector<16x128xf32>
    %148 = arith.mulf %143, %147 : vector<16x128xf32>
    %149 = vector.broadcast %125 : vector<1x128xf32> to vector<16x128xf32>
    %150 = arith.mulf %148, %149 : vector<16x128xf32>
    %151 = vector.broadcast %126 : vector<1x128xf32> to vector<16x128xf32>
    %152 = arith.addf %150, %151 : vector<16x128xf32>
    %153 = arith.truncf %152 : vector<16x128xf32> to vector<16x128xbf16>
    %c0_50 = arith.constant 0 : index
    %c0_51 = arith.constant 0 : index
    %154 = vector.load %arg11[%c0_50, %c0_51] : memref<128x128xbf16, #tpu.memory_space<vmem>>, vector<128x128xbf16>
    %cst_52 = arith.constant dense<0.000000e+00> : vector<16x128xf32>
    %155 = tpu.matmul %153, %154, %cst_52 {dimension_numbers = #tpu.dot_dimension_numbers<[1], [0], [0], [1], [0, 0, 1, 1], [], []>} : vector<16x128xbf16>, vector<128x128xbf16>, vector<16x128xf32> -> vector<16x128xf32>
    %c0_53 = arith.constant 0 : index
    %c0_54 = arith.constant 0 : index
    %156 = vector.load %arg12[%c0_53, %c0_54] : memref<1x128xf32, #tpu.memory_space<vmem>>, vector<1x128xf32>
    %157 = vector.broadcast %156 : vector<1x128xf32> to vector<16x128xf32>
    %158 = arith.addf %155, %157 : vector<16x128xf32>
    %cst_55 = arith.constant 5.000000e-01 : f32
    %159 = vector.broadcast %cst_55 : f32 to vector<16x128xf32>
    %160 = arith.mulf %159, %158 : vector<16x128xf32>
    %cst_56 = arith.constant 0.707106769 : f32
    %161 = vector.broadcast %cst_56 : f32 to vector<16x128xf32>
    %162 = arith.mulf %158, %161 : vector<16x128xf32>
    %cst_57 = arith.constant 0.000000e+00 : f32
    %163 = vector.broadcast %cst_57 : f32 to vector<16x128xf32>
    %164 = arith.cmpf oge, %162, %163 : vector<16x128xf32>
    %cst_58 = arith.constant 1.000000e+00 : f32
    %cst_59 = arith.constant -1.000000e+00 : f32
    %165 = vector.broadcast %cst_58 : f32 to vector<16x128xf32>
    %166 = vector.broadcast %cst_59 : f32 to vector<16x128xf32>
    %167 = arith.select %164, %165, %166 : vector<16x128xi1>, vector<16x128xf32>
    %168 = math.absf %162 : vector<16x128xf32>
    %cst_60 = arith.constant 0.327591091 : f32
    %169 = vector.broadcast %cst_60 : f32 to vector<16x128xf32>
    %170 = arith.mulf %169, %168 : vector<16x128xf32>
    %cst_61 = arith.constant 1.000000e+00 : f32
    %171 = vector.broadcast %cst_61 : f32 to vector<16x128xf32>
    %172 = arith.addf %171, %170 : vector<16x128xf32>
    %cst_62 = arith.constant 1.000000e+00 : f32
    %173 = vector.broadcast %cst_62 : f32 to vector<16x128xf32>
    %174 = arith.divf %173, %172 : vector<16x128xf32>
    %cst_63 = arith.constant 1.06140542 : f32
    %175 = vector.broadcast %cst_63 : f32 to vector<16x128xf32>
    %176 = arith.mulf %175, %174 : vector<16x128xf32>
    %cst_64 = arith.constant -1.45315206 : f32
    %177 = vector.broadcast %cst_64 : f32 to vector<16x128xf32>
    %178 = arith.addf %176, %177 : vector<16x128xf32>
    %179 = arith.mulf %178, %174 : vector<16x128xf32>
    %cst_65 = arith.constant 1.42141378 : f32
    %180 = vector.broadcast %cst_65 : f32 to vector<16x128xf32>
    %181 = arith.addf %179, %180 : vector<16x128xf32>
    %182 = arith.mulf %181, %174 : vector<16x128xf32>
    %cst_66 = arith.constant -0.284496725 : f32
    %183 = vector.broadcast %cst_66 : f32 to vector<16x128xf32>
    %184 = arith.addf %182, %183 : vector<16x128xf32>
    %185 = arith.mulf %184, %174 : vector<16x128xf32>
    %cst_67 = arith.constant 0.254829586 : f32
    %186 = vector.broadcast %cst_67 : f32 to vector<16x128xf32>
    %187 = arith.addf %185, %186 : vector<16x128xf32>
    %188 = arith.mulf %187, %174 : vector<16x128xf32>
    %cst_68 = arith.constant 0.000000e+00 : f32
    %189 = vector.broadcast %cst_68 : f32 to vector<16x128xf32>
    %190 = arith.subf %189, %168 : vector<16x128xf32>
    %191 = arith.mulf %190, %168 : vector<16x128xf32>
    %192 = math.exp %191 : vector<16x128xf32>
    %193 = arith.mulf %188, %192 : vector<16x128xf32>
    %cst_69 = arith.constant 1.000000e+00 : f32
    %194 = vector.broadcast %cst_69 : f32 to vector<16x128xf32>
    %195 = arith.subf %194, %193 : vector<16x128xf32>
    %196 = arith.mulf %167, %195 : vector<16x128xf32>
    %cst_70 = arith.constant 1.000000e+00 : f32
    %197 = vector.broadcast %cst_70 : f32 to vector<16x128xf32>
    %198 = arith.addf %197, %196 : vector<16x128xf32>
    %199 = arith.mulf %160, %198 : vector<16x128xf32>
    %200 = arith.truncf %199 : vector<16x128xf32> to vector<16x128xbf16>
    %c0_71 = arith.constant 0 : index
    %c0_72 = arith.constant 0 : index
    %201 = vector.load %arg13[%c0_71, %c0_72] : memref<128x128xbf16, #tpu.memory_space<vmem>>, vector<128x128xbf16>
    %cst_73 = arith.constant dense<0.000000e+00> : vector<16x128xf32>
    %202 = tpu.matmul %200, %201, %cst_73 {dimension_numbers = #tpu.dot_dimension_numbers<[1], [0], [0], [1], [0, 0, 1, 1], [], []>} : vector<16x128xbf16>, vector<128x128xbf16>, vector<16x128xf32> -> vector<16x128xf32>
    %c0_74 = arith.constant 0 : index
    %c0_75 = arith.constant 0 : index
    %203 = vector.load %arg14[%c0_74, %c0_75] : memref<1x128xf32, #tpu.memory_space<vmem>>, vector<1x128xf32>
    %204 = vector.broadcast %203 : vector<1x128xf32> to vector<16x128xf32>
    %205 = arith.addf %202, %204 : vector<16x128xf32>
    %206 = arith.addf %124, %205 : vector<16x128xf32>
    %207 = vector.shape_cast %206 : vector<16x128xf32> to vector<2x8x128xf32>
    %c0_76 = arith.constant 0 : index
    %c0_77 = arith.constant 0 : index
    %c0_78 = arith.constant 0 : index
    %208 = vector.load %arg15[%c0_76, %c0_77, %c0_78] : memref<2x8x128xf32, #tpu.memory_space<vmem>>, vector<2x8x128xf32>
    tpu.vector_store %arg15[%c0_76, %c0_77, %c0_78], %207 {strides = array<i32>} : memref<2x8x128xf32, #tpu.memory_space<vmem>>, vector<2x8x128xf32>,
    return
  }
  func.func @transform_0(%arg0: i32) -> (i32, i32, i32) {
    %c0_i32 = arith.constant 0 : i32
    %c0_i32_0 = arith.constant 0 : i32
    %c0_i32_1 = arith.constant 0 : i32
    return %arg0, %c0_i32, %c0_i32_0 : i32, i32, i32
  }
  func.func @transform_1(%arg0: i32) -> (i32, i32, i32) {
    %c0_i32 = arith.constant 0 : i32
    %c0_i32_0 = arith.constant 0 : i32
    %c0_i32_1 = arith.constant 0 : i32
    %c0_i32_2 = arith.constant 0 : i32
    return %c0_i32, %c0_i32_0, %c0_i32_1 : i32, i32, i32
  }
  func.func @transform_2(%arg0: i32) -> (i32, i32) {
    %c0_i32 = arith.constant 0 : i32
    %c0_i32_0 = arith.constant 0 : i32
    %c0_i32_1 = arith.constant 0 : i32
    return %c0_i32, %c0_i32_0 : i32, i32
  }
  func.func @transform_3(%arg0: i32) -> (i32, i32) {
    %c0_i32 = arith.constant 0 : i32
    %c0_i32_0 = arith.constant 0 : i32
    %c0_i32_1 = arith.constant 0 : i32
    return %c0_i32, %c0_i32_0 : i32, i32
  }
  func.func @transform_4(%arg0: i32) -> (i32, i32) {
    %c0_i32 = arith.constant 0 : i32
    %c0_i32_0 = arith.constant 0 : i32
    %c0_i32_1 = arith.constant 0 : i32
    return %c0_i32, %c0_i32_0 : i32, i32
  }
  func.func @transform_5(%arg0: i32) -> (i32, i32) {
    %c0_i32 = arith.constant 0 : i32
    %c0_i32_0 = arith.constant 0 : i32
    %c0_i32_1 = arith.constant 0 : i32
    return %c0_i32, %c0_i32_0 : i32, i32
  }
  func.func @transform_6(%arg0: i32) -> (i32, i32) {
    %c0_i32 = arith.constant 0 : i32
    %c0_i32_0 = arith.constant 0 : i32
    %c0_i32_1 = arith.constant 0 : i32
    return %c0_i32, %c0_i32_0 : i32, i32
  }
  func.func @transform_7(%arg0: i32) -> (i32, i32) {
    %c0_i32 = arith.constant 0 : i32
    %c0_i32_0 = arith.constant 0 : i32
    %c0_i32_1 = arith.constant 0 : i32
    return %c0_i32, %c0_i32_0 : i32, i32
  }
  func.func @transform_8(%arg0: i32) -> (i32, i32) {
    %c0_i32 = arith.constant 0 : i32
    %c0_i32_0 = arith.constant 0 : i32
    %c0_i32_1 = arith.constant 0 : i32
    return %c0_i32, %c0_i32_0 : i32, i32
  }
  func.func @transform_9(%arg0: i32) -> (i32, i32) {
    %c0_i32 = arith.constant 0 : i32
    %c0_i32_0 = arith.constant 0 : i32
    %c0_i32_1 = arith.constant 0 : i32
    return %c0_i32, %c0_i32_0 : i32, i32
  }
  func.func @transform_10(%arg0: i32) -> (i32, i32) {
    %c0_i32 = arith.constant 0 : i32
    %c0_i32_0 = arith.constant 0 : i32
    %c0_i32_1 = arith.constant 0 : i32
    return %c0_i32, %c0_i32_0 : i32, i32
  }
  func.func @transform_11(%arg0: i32) -> (i32, i32) {
    %c0_i32 = arith.constant 0 : i32
    %c0_i32_0 = arith.constant 0 : i32
    %c0_i32_1 = arith.constant 0 : i32
    return %c0_i32, %c0_i32_0 : i32, i32
  }
  func.func @transform_12(%arg0: i32) -> (i32, i32) {
    %c0_i32 = arith.constant 0 : i32
    %c0_i32_0 = arith.constant 0 : i32
    %c0_i32_1 = arith.constant 0 : i32
    return %c0_i32, %c0_i32_0 : i32, i32
  }
  func.func @transform_13(%arg0: i32) -> (i32, i32) {
    %c0_i32 = arith.constant 0 : i32
    %c0_i32_0 = arith.constant 0 : i32
    %c0_i32_1 = arith.constant 0 : i32
    return %c0_i32, %c0_i32_0 : i32, i32
  }
  func.func @transform_14(%arg0: i32) -> (i32, i32, i32) {
    %c0_i32 = arith.constant 0 : i32
    %c0_i32_0 = arith.constant 0 : i32
    %c0_i32_1 = arith.constant 0 : i32
    return %arg0, %c0_i32, %c0_i32_0 : i32, i32, i32
  }
}

</mosaic_0001>

<llo_original>
// kernel: tpu_custom_call.1
$region0: #{tpu_custom_call.1}
  #allocation0 [shape = 'u32[]', space=smem, size = 0x4, offset = 0x4, fixed_abs, tag = 'smem constant byte address 0x4 - core index']
  #allocation1 [shape = 'u32[144,128]{1,0:T(1,128)}', space=vmem, size = 0x12000, scoped, tag = 'internal scratch']
  %s0 = inlined_call_operand.hbm [shape: f32[2,8,128], index: 0, kind: input, shape index: {}]
  %s1 = inlined_call_operand.hbm [shape: f32[1,8,128], index: 1, kind: input, shape index: {}]
  %s2 = inlined_call_operand.vmem [shape: f32[1,128], index: 2, kind: input, shape index: {}]
  %s3 = inlined_call_operand.vmem [shape: f32[1,128], index: 3, kind: input, shape index: {}]
  %s4 = inlined_call_operand.hbm [shape: bf16[128,384], index: 4, kind: input, shape index: {}]
  %s5 = inlined_call_operand.vmem [shape: f32[1,384], index: 5, kind: input, shape index: {}]
  %s6 = inlined_call_operand.vmem [shape: bf16[32,128], index: 6, kind: input, shape index: {}]
  %s7 = inlined_call_operand.vmem [shape: f32[1,128], index: 7, kind: input, shape index: {}]
  %s8 = inlined_call_operand.vmem [shape: f32[1,128], index: 8, kind: input, shape index: {}]
  %s9 = inlined_call_operand.vmem [shape: f32[1,128], index: 9, kind: input, shape index: {}]
  %s10 = inlined_call_operand.hbm [shape: bf16[128,128], index: 10, kind: input, shape index: {}]
  %s11 = inlined_call_operand.vmem [shape: f32[1,128], index: 11, kind: input, shape index: {}]
  %s12 = inlined_call_operand.hbm [shape: bf16[128,128], index: 12, kind: input, shape index: {}]
  %s13 = inlined_call_operand.vmem [shape: f32[1,128], index: 13, kind: input, shape index: {}]
  %s14 = inlined_call_operand.hbm [shape: f32[2,8,128], index: 14, kind: output, shape index: {}]
  %s15 = sld [smem:[#allocation0]]
  $region86: #{tpu_custom_call.1} parent=0
    _
  %s17 = ssub.s32 1, %s15
  %s18 = scalar_select 0, %s17, %s15
  $region1: #{tpu_custom_call.1} parent=0
    #allocation2 [shape = 'u8[8192]{0}', space=vmem, size = 0x2000, scoped, tag = 'input window, operand 0, single buffered']
    #allocation3 [shape = 's32[1]{0}', space=sflag, size = 0x4, scoped, tag = 'scoped memory for tpu_custom_call.1']
    #allocation4 [shape = 's32[1]{0}', space=sflag, size = 0x4, scoped, tag = 'scoped memory for tpu_custom_call.1']
    #allocation5 [shape = 'u8[4096]{0}', space=vmem, size = 0x1000, scoped, tag = 'input window, operand 1, single buffered']
    #allocation6 [shape = 's32[1]{0}', space=sflag, size = 0x4, scoped, tag = 'scoped memory for tpu_custom_call.1']
    #allocation7 [shape = 'u8[98304]{0}', space=vmem, size = 0x18000, scoped, tag = 'input window, operand 4, single buffered']
    #allocation8 [shape = 'u8[32768]{0}', space=vmem, size = 0x8000, scoped, tag = 'input window, operand 10, single buffered']
    #allocation9 [shape = 's32[1]{0}', space=sflag, size = 0x4, scoped, tag = 'scoped memory for tpu_custom_call.1']
    #allocation10 [shape = 'u8[32768]{0}', space=vmem, size = 0x8000, scoped, tag = 'input window, operand 12, single buffered']
    #allocation11 [shape = 'u8[8192]{0}', space=vmem, size = 0x2000, scoped, tag = 'output window, operand 0, single buffered']
    %19 = vsyncpa [#allocation3], 0
    %20 = vsyncpa [#allocation6], 0
    %21 = vsyncpa [#allocation9], 0
    %22 = vsyncpa [#allocation4], 0
    // Predicated region
    $region2: #{tpu_custom_call.1} parent=1 // pred_check
      _
    $region3: #{tpu_custom_call.1} parent=1 // pred_check_branch
      %24 = sbr.rel (0) target = $region5
    $region4: #{tpu_custom_call.1} parent=1 // pred_region
      %s26 = ssub.s32 256, 256
      %27 = vsyncadd [#allocation3], %s26
      %s28 = sshll.u32 [#allocation2], 4
      %s29 = int_to_ptr.vmem [resolvable:$true] %s28
      %34 = dma.hbm_to_vmem [thread:$0]  %s0, 256, %s29, [#allocation3], 128, 128, 8
    $region5: #{tpu_custom_call.1} parent=1 // pred_fallthru
      _
    // Predicated region
    $region6: #{tpu_custom_call.1} parent=1 // pred_check
      _
    $region7: #{tpu_custom_call.1} parent=1 // pred_check_branch
      %36 = sbr.rel (0) target = $region9
    $region8: #{tpu_custom_call.1} parent=1 // pred_region
      %s38 = ssub.s32 128, 128
      %39 = vsyncadd [#allocation6], %s38
      %s41 = sshll.u32 [#allocation5], 4
      %s42 = int_to_ptr.vmem [resolvable:$true] %s41
      %44 = dma.hbm_to_vmem [thread:$0]  %s1, 128, %s42, [#allocation6]
    $region9: #{tpu_custom_call.1} parent=1 // pred_fallthru
      _
    // Predicated region
    $region10: #{tpu_custom_call.1} parent=1 // pred_check
      _
    $region11: #{tpu_custom_call.1} parent=1 // pred_check_branch
      %46 = sbr.rel (0) target = $region13
    $region12: #{tpu_custom_call.1} parent=1 // pred_region
      _
    $region13: #{tpu_custom_call.1} parent=1 // pred_fallthru
      _
    // Predicated region
    $region14: #{tpu_custom_call.1} parent=1 // pred_check
      _
    $region15: #{tpu_custom_call.1} parent=1 // pred_check_branch
      %48 = sbr.rel (0) target = $region17
    $region16: #{tpu_custom_call.1} parent=1 // pred_region
      _
    $region17: #{tpu_custom_call.1} parent=1 // pred_fallthru
      _
    // Predicated region
    $region18: #{tpu_custom_call.1} parent=1 // pred_check
      _
    $region19: #{tpu_custom_call.1} parent=1 // pred_check_branch
      %50 = sbr.rel (0) target = $region21
    $region20: #{tpu_custom_call.1} parent=1 // pred_region
      %s52 = ssub.s32 3072, 3072
      %53 = vsyncadd [#allocation6], %s52
      %s54 = sshll.u32 [#allocation7], 4
      %s55 = int_to_ptr.vmem [resolvable:$true] %s54
      %60 = dma.hbm_to_vmem [thread:$0]  %s4, 3072, %s55, [#allocation6], 192, 192, 12
    $region21: #{tpu_custom_call.1} parent=1 // pred_fallthru
      _
    // Predicated region
    $region22: #{tpu_custom_call.1} parent=1 // pred_check
      _
    $region23: #{tpu_custom_call.1} parent=1 // pred_check_branch
      %62 = sbr.rel (0) target = $region25
    $region24: #{tpu_custom_call.1} parent=1 // pred_region
      _
    $region25: #{tpu_custom_call.1} parent=1 // pred_fallthru
      _
    // Predicated region
    $region26: #{tpu_custom_call.1} parent=1 // pred_check
      _
    $region27: #{tpu_custom_call.1} parent=1 // pred_check_branch
      %64 = sbr.rel (0) target = $region29
    $region28: #{tpu_custom_call.1} parent=1 // pred_region
      _
    $region29: #{tpu_custom_call.1} parent=1 // pred_fallthru
      _
    // Predicated region
    $region30: #{tpu_custom_call.1} parent=1 // pred_check
      _
    $region31: #{tpu_custom_call.1} parent=1 // pred_check_branch
      %66 = sbr.rel (0) target = $region33
    $region32: #{tpu_custom_call.1} parent=1 // pred_region
      _
    $region33: #{tpu_custom_call.1} parent=1 // pred_fallthru
      _
    // Predicated region
    $region34: #{tpu_custom_call.1} parent=1 // pred_check
      _
    $region35: #{tpu_custom_call.1} parent=1 // pred_check_branch
      %68 = sbr.rel (0) target = $region37
    $region36: #{tpu_custom_call.1} parent=1 // pred_region
      _
    $region37: #{tpu_custom_call.1} parent=1 // pred_fallthru
      _
    // Predicated region
    $region38: #{tpu_custom_call.1} parent=1 // pred_check
      _
    $region39: #{tpu_custom_call.1} parent=1 // pred_check_branch
      %70 = sbr.rel (0) target = $region41
    $region40: #{tpu_custom_call.1} parent=1 // pred_region
      _
    $region41: #{tpu_custom_call.1} parent=1 // pred_fallthru
      _
    // Predicated region
    $region42: #{tpu_custom_call.1} parent=1 // pred_check
      _
    $region43: #{tpu_custom_call.1} parent=1 // pred_check_branch
      %72 = sbr.rel (0) target = $region45
    $region44: #{tpu_custom_call.1} parent=1 // pred_region
      %s74 = ssub.s32 1024, 1024
      %75 = vsyncadd [#allocation9], %s74
      %s76 = sshll.u32 [#allocation8], 4
      %s77 = int_to_ptr.vmem [resolvable:$true] %s76
      %82 = dma.hbm_to_vmem [thread:$0]  %s10, 1024, %s77, [#allocation9], 64, 64, 4
    $region45: #{tpu_custom_call.1} parent=1 // pred_fallthru
      _
    // Predicated region
    $region46: #{tpu_custom_call.1} parent=1 // pred_check
      _
    $region47: #{tpu_custom_call.1} parent=1 // pred_check_branch
      %84 = sbr.rel (0) target = $region49
    $region48: #{tpu_custom_call.1} parent=1 // pred_region
      _
    $region49: #{tpu_custom_call.1} parent=1 // pred_fallthru
      _
    // Predicated region
    $region50: #{tpu_custom_call.1} parent=1 // pred_check
      _
    $region51: #{tpu_custom_call.1} parent=1 // pred_check_branch
      %86 = sbr.rel (0) target = $region53
    $region52: #{tpu_custom_call.1} parent=1 // pred_region
      %s88 = ssub.s32 1024, 1024
      %89 = vsyncadd [#allocation9], %s88
      %s90 = sshll.u32 [#allocation10], 4
      %s91 = int_to_ptr.vmem [resolvable:$true] %s90
      %96 = dma.hbm_to_vmem [thread:$0]  %s12, 1024, %s91, [#allocation9], 64, 64, 4
    $region53: #{tpu_custom_call.1} parent=1 // pred_fallthru
      _
    // Predicated region
    $region54: #{tpu_custom_call.1} parent=1 // pred_check
      _
    $region55: #{tpu_custom_call.1} parent=1 // pred_check_branch
      %98 = sbr.rel (0) target = $region57
    $region56: #{tpu_custom_call.1} parent=1 // pred_region
      _
    $region57: #{tpu_custom_call.1} parent=1 // pred_fallthru
      _
    // Predicated region
    $region58: #{tpu_custom_call.1} parent=1 // pred_check
      _
    $region59: #{tpu_custom_call.1} parent=1 // pred_check_branch
      %100 = sbr.rel (0) target = $region61
    $region60: #{tpu_custom_call.1} parent=1 // pred_region
      %101 = dma.done [#allocation3], 256
    $region61: #{tpu_custom_call.1} parent=1 // pred_fallthru
      _
    // Predicated region
    $region62: #{tpu_custom_call.1} parent=1 // pred_check
      _
    $region63: #{tpu_custom_call.1} parent=1 // pred_check_branch
      %103 = sbr.rel (0) target = $region65
    $region64: #{tpu_custom_call.1} parent=1 // pred_region
      %104 = dma.done [#allocation6], 128
    $region65: #{tpu_custom_call.1} parent=1 // pred_fallthru
      _
    // Predicated region
    $region66: #{tpu_custom_call.1} parent=1 // pred_check
      _
    $region67: #{tpu_custom_call.1} parent=1 // pred_check_branch
      %106 = sbr.rel (0) target = $region69
    $region68: #{tpu_custom_call.1} parent=1 // pred_region
      %107 = dma.done [#allocation6], 3072
    $region69: #{tpu_custom_call.1} parent=1 // pred_fallthru
      _
    // Predicated region
    $region70: #{tpu_custom_call.1} parent=1 // pred_check
      _
    $region71: #{tpu_custom_call.1} parent=1 // pred_check_branch
      %109 = sbr.rel (0) target = $region73
    $region72: #{tpu_custom_call.1} parent=1 // pred_region
      %110 = dma.done [#allocation9], 1024
    $region73: #{tpu_custom_call.1} parent=1 // pred_fallthru
      _
    // Predicated region
    $region74: #{tpu_custom_call.1} parent=1 // pred_check
      _
    $region75: #{tpu_custom_call.1} parent=1 // pred_check_branch
      %112 = sbr.rel (0) target = $region77
    $region76: #{tpu_custom_call.1} parent=1 // pred_region
      %113 = dma.done [#allocation9], 1024
    $region77: #{tpu_custom_call.1} parent=1 // pred_fallthru
      _
    %v115 = vld [vmem:[#allocation2] sm:$0xff]
    %v116 = vld [vmem:[#allocation2 + $0x8] sm:$0xff]
    %v117 = vld [vmem:[#allocation5] sm:$0xff]
    %v118 = vadd.f32 %v115, %v117
    %v119 = vadd.f32 %v116, %v117
    %v120 = vld [vmem:[%s2] sm:$0x1]
    %v121 = vld [vmem:[%s3] sm:$0x1]
    %122 = vadd.xlane.f32.xlu0 %v118
    %v123 = vpop.xlane.xlu0 %122
    %124 = vadd.xlane.f32.xlu0 %v119
    %v125 = vpop.xlane.xlu0 %124
    %v126 = vrcp.pop 32.0
    %v127 = vmul.f32 %v123, %v126
    %v128 = vmul.f32 %v125, %v126
    %v129 = vsub.f32 %v118, %v127
    %v130 = vsub.f32 %v119, %v128
    %v131 = vmul.f32 %v129, %v129
    %v132 = vmul.f32 %v130, %v130
    %133 = vadd.xlane.f32.xlu0 %v131
    %v134 = vpop.xlane.xlu0 %133
    %135 = vadd.xlane.f32.xlu0 %v132
    %v136 = vpop.xlane.xlu0 %135
    %v137 = vmul.f32 %v127, %v127
    %v138 = vmul.f32 %v128, %v128
    %v139 = vmul.f32 %v137, 96.0
    %v140 = vmul.f32 %v138, 96.0
    %v141 = vsub.f32 %v134, %v139
    %v142 = vsub.f32 %v136, %v140
    %v143 = vmul.f32 %v141, %v126
    %v144 = vmul.f32 %v142, %v126
    %v145 = vadd.f32 %v143, 1e-06
    %v146 = vadd.f32 %v144, 1e-06
    %v147 = vrsqrt.pop %v145
    %v148 = vrsqrt.pop %v146
    %v149 = vmul.f32 %v129, %v147
    %v150 = vmul.f32 %v130, %v148
    %v152 = vlaneseq
    %v153 = vshrl.u32 %v152, 7
    %v154 = vsub.s32 0, %v153
    %v155 = vrot.slane %v120, %v154
    %v157 = vmul.f32 %v149, %v155
    %v158 = vmul.f32 %v150, %v155
    %v160 = vlaneseq
    %v161 = vshrl.u32 %v160, 7
    %v162 = vsub.s32 0, %v161
    %v163 = vrot.slane %v121, %v162
    %v165 = vadd.f32 %v157, %v163
    %v166 = vadd.f32 %v158, %v163
    %v167 = vpack.c.bf16 %v166, %v165
    %v168 = vld [vmem:[#allocation7] sm:$0xff]
    %v169 = vld [vmem:[#allocation7 + $0x8] sm:$0xf]
    %v170 = vld [vmem:[#allocation7 + $0xc] sm:$0xff]
    %v171 = vld [vmem:[#allocation7 + $0x14] sm:$0xf]
    %v172 = vld [vmem:[#allocation7 + $0x18] sm:$0xff]
    %v173 = vld [vmem:[#allocation7 + $0x20] sm:$0xf]
    %v174 = vld [vmem:[#allocation7 + $0x24] sm:$0xff]
    %v175 = vld [vmem:[#allocation7 + $0x2c] sm:$0xf]
    %v176 = vld [vmem:[#allocation7 + $0x30] sm:$0xff]
    %v177 = vld [vmem:[#allocation7 + $0x38] sm:$0xf]
    %v178 = vld [vmem:[#allocation7 + $0x3c] sm:$0xff]
    %v179 = vld [vmem:[#allocation7 + $0x44] sm:$0xf]
    %v180 = vld [vmem:[#allocation7 + $0x48] sm:$0xff]
    %v181 = vld [vmem:[#allocation7 + $0x50] sm:$0xf]
    %v182 = vld [vmem:[#allocation7 + $0x54] sm:$0xff]
    %v183 = vld [vmem:[#allocation7 + $0x5c] sm:$0xf]
    %v184 = vld [vmem:[#allocation7 + $0x60] sm:$0xff]
    %v185 = vld [vmem:[#allocation7 + $0x68] sm:$0xf]
    %v186 = vld [vmem:[#allocation7 + $0x6c] sm:$0xff]
    %v187 = vld [vmem:[#allocation7 + $0x74] sm:$0xf]
    %v188 = vld [vmem:[#allocation7 + $0x78] sm:$0xff]
    %v189 = vld [vmem:[#allocation7 + $0x80] sm:$0xf]
    %v190 = vld [vmem:[#allocation7 + $0x84] sm:$0xff]
    %v191 = vld [vmem:[#allocation7 + $0x8c] sm:$0xf]
    %v192 = vld [vmem:[#allocation7 + $0x90] sm:$0xff]
    %v193 = vld [vmem:[#allocation7 + $0x98] sm:$0xf]
    %v194 = vld [vmem:[#allocation7 + $0x9c] sm:$0xff]
    %v195 = vld [vmem:[#allocation7 + $0xa4] sm:$0xf]
    %v196 = vld [vmem:[#allocation7 + $0xa8] sm:$0xff]
    %v197 = vld [vmem:[#allocation7 + $0xb0] sm:$0xf]
    %v198 = vld [vmem:[#allocation7 + $0xb4] sm:$0xff]
    %v199 = vld [vmem:[#allocation7 + $0xbc] sm:$0xf]
    %v200 = vld [vmem:[%s5] sm:$0x7]
    %v202 = vlaneseq
    %v203 = vshrl.u32 %v202, 7
    %v204 = vsub.s32 0, %v203
    %v205 = vrot.slane %v200, %v204
    %v206 = vlaneseq
    %v207 = vshrl.u32 %v206, 7
    %v208 = vsub.s32 1, %v207
    %v209 = vrot.slane %v200, %v208
    %v210 = vlaneseq
    %v211 = vshrl.u32 %v210, 7
    %v212 = vsub.s32 2, %v211
    %v213 = vrot.slane %v200, %v212
    %v249 = vunpack.c.l.b16 %v168
    %v250 = vunpack.c.h.b16 %v168
    %v251 = vunpack.c.l.b16 %v169
    %v252 = vunpack.c.l.b16 %v170
    %v253 = vunpack.c.h.b16 %v170
    %v254 = vunpack.c.l.b16 %v171
    %v255 = vunpack.c.l.b16 %v172
    %v256 = vunpack.c.h.b16 %v172
    %v257 = vunpack.c.l.b16 %v173
    %v258 = vunpack.c.l.b16 %v174
    %v259 = vunpack.c.h.b16 %v174
    %v260 = vunpack.c.l.b16 %v175
    %v261 = vunpack.c.l.b16 %v176
    %v262 = vunpack.c.h.b16 %v176
    %v263 = vunpack.c.l.b16 %v177
    %v264 = vunpack.c.l.b16 %v178
    %v265 = vunpack.c.h.b16 %v178
    %v266 = vunpack.c.l.b16 %v179
    %v267 = vunpack.c.l.b16 %v180
    %v268 = vunpack.c.h.b16 %v180
    %v269 = vunpack.c.l.b16 %v181
    %v270 = vunpack.c.l.b16 %v182
    %v271 = vunpack.c.h.b16 %v182
    %v272 = vunpack.c.l.b16 %v183
    %v273 = vunpack.c.l.b16 %v184
    %v274 = vunpack.c.h.b16 %v184
    %v275 = vunpack.c.l.b16 %v185
    %v276 = vunpack.c.l.b16 %v186
    %v277 = vunpack.c.h.b16 %v186
    %v278 = vunpack.c.l.b16 %v187
    %v279 = vunpack.c.l.b16 %v188
    %v280 = vunpack.c.h.b16 %v188
    %v281 = vunpack.c.l.b16 %v189
    %v282 = vunpack.c.l.b16 %v190
    %v283 = vunpack.c.h.b16 %v190
    %v284 = vunpack.c.l.b16 %v191
    %v285 = vunpack.c.l.b16 %v192
    %v286 = vunpack.c.h.b16 %v192
    %v287 = vunpack.c.l.b16 %v193
    %v288 = vunpack.c.l.b16 %v194
    %v289 = vunpack.c.h.b16 %v194
    %v290 = vunpack.c.l.b16 %v195
    %v291 = vunpack.c.l.b16 %v196
    %v292 = vunpack.c.h.b16 %v196
    %v293 = vunpack.c.l.b16 %v197
    %v294 = vunpack.c.l.b16 %v198
    %v295 = vunpack.c.h.b16 %v198
    %v296 = vunpack.c.l.b16 %v199
    %v297 = vpack.c.b16 %v252, %v249
    %v298 = vpack.c.b16 %v253, %v250
    %v299 = vpack.c.b16 %v254, %v251
    %v300 = vpack.c.b16 %v258, %v255
    %v301 = vpack.c.b16 %v259, %v256
    %v302 = vpack.c.b16 %v260, %v257
    %v303 = vpack.c.b16 %v264, %v261
    %v304 = vpack.c.b16 %v265, %v262
    %v305 = vpack.c.b16 %v266, %v263
    %v306 = vpack.c.b16 %v270, %v267
    %v307 = vpack.c.b16 %v271, %v268
    %v308 = vpack.c.b16 %v272, %v269
    %v309 = vpack.c.b16 %v276, %v273
    %v310 = vpack.c.b16 %v277, %v274
    %v311 = vpack.c.b16 %v278, %v275
    %v312 = vpack.c.b16 %v282, %v279
    %v313 = vpack.c.b16 %v283, %v280
    %v314 = vpack.c.b16 %v284, %v281
    %v315 = vpack.c.b16 %v288, %v285
    %v316 = vpack.c.b16 %v289, %v286
    %v317 = vpack.c.b16 %v290, %v287
    %v318 = vpack.c.b16 %v294, %v291
    %v319 = vpack.c.b16 %v295, %v292
    %v320 = vpack.c.b16 %v296, %v293
    %345 = vmatprep.subr.bf16.mxu0 %v298
    %346 = vmatpush1.bf16.msra.mxu0 %v297
    %347 = vmatprep.subr.bf16.mxu0 %v301
    %348 = vmatpush1.bf16.msra.mxu0 %v300
    %349 = vmatprep.subr.bf16.mxu0 %v304
    %350 = vmatpush1.bf16.msra.mxu0 %v303
    %351 = vmatprep.subr.bf16.mxu0 %v307
    %352 = vmatpush1.bf16.msra.mxu0 %v306
    %353 = vmatprep.subr.bf16.mxu0 %v310
    %354 = vmatpush1.bf16.msra.mxu0 %v309
    %355 = vmatprep.subr.bf16.mxu0 %v313
    %356 = vmatpush1.bf16.msra.mxu0 %v312
    %357 = vmatprep.subr.bf16.mxu0 %v316
    %358 = vmatpush1.bf16.msra.mxu0 %v315
    %359 = vmatprep.subr.bf16.mxu0 %v319
    %360 = vmatpush1.bf16.msra.mxu0 %v318
    %361 = vmatprep.subr.bf16.mxu0 0
    %362 = vmatpush1.bf16.msra.mxu0 0
    %363 = vmatprep.subr.bf16.mxu0 0
    %364 = vmatpush1.bf16.msra.mxu0 0
    %365 = vmatprep.subr.bf16.mxu0 0
    %366 = vmatpush1.bf16.msra.mxu0 0
    %367 = vmatprep.subr.bf16.mxu0 0
    %368 = vmatpush1.bf16.msra.mxu0 0
    %369 = vmatprep.subr.bf16.mxu0 0
    %370 = vmatpush1.bf16.msra.mxu0 0
    %371 = vmatprep.subr.bf16.mxu0 0
    %372 = vmatpush1.bf16.msra.mxu0 0
    %373 = vmatprep.subr.bf16.mxu0 0
    %374 = vmatpush1.bf16.msra.mxu0 0
    %375 = vmatprep.subr.bf16.mxu0 0
    %376 = vmatpush1.bf16.msra.mxu0 0
    %377 = vmatprep.mubr.bf16.mxu0 0
    %378 = vmatmul.mubr.bf16.gmra.mrb[0].mxu0 %v167
    %v379 = vpop.f32.mrb[0].mxu0
    %v380 = vadd.f32 %v205, %v379
    %v381 = vpop.f32.mrb[0].mxu0
    %v382 = vadd.f32 %v209, %v381
    %v383 = vpop.f32.mrb[0].mxu0
    %v384 = vadd.f32 %v205, %v383
    %v385 = vpop.f32.mrb[0].mxu0
    %v386 = vadd.f32 %v209, %v385
    %387 = vdwg.mxu0
    %388 = vmatprep.subr.bf16.mxu0 0
    %389 = vmatpush1.bf16.msra.mxu0 %v299
    %390 = vmatprep.subr.bf16.mxu0 0
    %391 = vmatpush1.bf16.msra.mxu0 %v302
    %392 = vmatprep.subr.bf16.mxu0 0
    %393 = vmatpush1.bf16.msra.mxu0 %v305
    %394 = vmatprep.subr.bf16.mxu0 0
    %395 = vmatpush1.bf16.msra.mxu0 %v308
    %396 = vmatprep.subr.bf16.mxu0 0
    %397 = vmatpush1.bf16.msra.mxu0 %v311
    %398 = vmatprep.subr.bf16.mxu0 0
    %399 = vmatpush1.bf16.msra.mxu0 %v314
    %400 = vmatprep.subr.bf16.mxu0 0
    %401 = vmatpush1.bf16.msra.mxu0 %v317
    %402 = vmatprep.subr.bf16.mxu0 0
    %403 = vmatpush1.bf16.msra.mxu0 %v320
    %404 = vmatprep.subr.bf16.mxu0 0
    %405 = vmatpush1.bf16.msra.mxu0 0
    %406 = vmatprep.subr.bf16.mxu0 0
    %407 = vmatpush1.bf16.msra.mxu0 0
    %408 = vmatprep.subr.bf16.mxu0 0
    %409 = vmatpush1.bf16.msra.mxu0 0
    %410 = vmatprep.subr.bf16.mxu0 0
    %411 = vmatpush1.bf16.msra.mxu0 0
    %412 = vmatprep.subr.bf16.mxu0 0
    %413 = vmatpush1.bf16.msra.mxu0 0
    %414 = vmatprep.subr.bf16.mxu0 0
    %415 = vmatpush1.bf16.msra.mxu0 0
    %416 = vmatprep.subr.bf16.mxu0 0
    %417 = vmatpush1.bf16.msra.mxu0 0
    %418 = vmatprep.subr.bf16.mxu0 0
    %419 = vmatpush1.bf16.msra.mxu0 0
    %420 = vmatprep.mubr.bf16.mxu0 0
    %421 = vmatmul.mubr.bf16.gmra.mrb[0].mxu0 %v167
    %v422 = vpop.f32.mrb[0].mxu0
    %v423 = vadd.f32 %v213, %v422
    %v424 = vpop.f32.mrb[0].mxu0
    %v425 = vpop.f32.mrb[0].mxu0
    %v426 = vadd.f32 %v213, %v425
    %v427 = vpop.f32.mrb[0].mxu0
    %428 = vdwg.mxu0
    %v429 = vpack.c.bf16 %v380, %v380
    %v430 = vpack.c.bf16 %v384, %v384
    %v431 = vpack.c.bf16 %v382, %v382
    %v432 = vpack.c.bf16 %v386, %v386
    %v433 = vpack.c.bf16 %v423, %v423
    %v434 = vpack.c.bf16 %v426, %v426
    %vm435 = vcmask 64512
    %v437 = vsel %vm435, %v429, 0
    %v440 = vsel %vm435, %v431, 0
    %442 = vmatprep.subr.bf16.mxu0 0
    %443 = vmatpush1.bf16.xpose.msra.mxu0 %v440
    %444 = vmatprep.subr.bf16.mxu0 0
    %445 = vmatpush1.bf16.xpose.msra.mxu0 0
    %446 = vmatprep.subr.bf16.mxu0 0
    %447 = vmatpush1.bf16.xpose.msra.mxu0 0
    %448 = vmatprep.subr.bf16.mxu0 0
    %449 = vmatpush1.bf16.xpose.msra.mxu0 0
    %450 = vmatprep.subr.bf16.mxu0 0
    %451 = vmatpush1.bf16.xpose.msra.mxu0 0
    %452 = vmatprep.subr.bf16.mxu0 0
    %453 = vmatpush1.bf16.xpose.msra.mxu0 0
    %454 = vmatprep.subr.bf16.mxu0 0
    %455 = vmatpush1.bf16.xpose.msra.mxu0 0
    %456 = vmatprep.subr.bf16.mxu0 0
    %457 = vmatpush1.bf16.xpose.msra.mxu0 0
    %458 = vmatprep.subr.bf16.mxu0 0
    %459 = vmatpush1.bf16.xpose.msra.mxu0 0
    %460 = vmatprep.subr.bf16.mxu0 0
    %461 = vmatpush1.bf16.xpose.msra.mxu0 0
    %462 = vmatprep.subr.bf16.mxu0 0
    %463 = vmatpush1.bf16.xpose.msra.mxu0 0
    %464 = vmatprep.subr.bf16.mxu0 0
    %465 = vmatpush1.bf16.xpose.msra.mxu0 0
    %466 = vmatprep.subr.bf16.mxu0 0
    %467 = vmatpush1.bf16.xpose.msra.mxu0 0
    %468 = vmatprep.subr.bf16.mxu0 0
    %469 = vmatpush1.bf16.xpose.msra.mxu0 0
    %470 = vmatprep.subr.bf16.mxu0 0
    %471 = vmatpush1.bf16.xpose.msra.mxu0 0
    %472 = vmatprep.subr.bf16.mxu0 0
    %473 = vmatpush1.bf16.xpose.msra.mxu0 0
    %474 = vmatprep.mubr.bf16.mxu0 0
    %475 = vmatmul.mubr.bf16.gmra.mrb[0].mxu0 %v437
    %v476 = vpop.f32.mrb[0].mxu0
    %v477 = vadd.f32 0.0, %v476
    %v478 = vpop.f32.mrb[0].mxu0
    %v479 = vpop.f32.mrb[0].mxu0
    %v480 = vpop.f32.mrb[0].mxu0
    %481 = vdwg.mxu0
    %v483 = vsel %vm435, %v430, 0
    %v486 = vsel %vm435, %v432, 0
    %488 = vmatprep.subr.bf16.mxu0 0
    %489 = vmatpush1.bf16.xpose.msra.mxu0 %v486
    %490 = vmatprep.subr.bf16.mxu0 0
    %491 = vmatpush1.bf16.xpose.msra.mxu0 0
    %492 = vmatprep.subr.bf16.mxu0 0
    %493 = vmatpush1.bf16.xpose.msra.mxu0 0
    %494 = vmatprep.subr.bf16.mxu0 0
    %495 = vmatpush1.bf16.xpose.msra.mxu0 0
    %496 = vmatprep.subr.bf16.mxu0 0
    %497 = vmatpush1.bf16.xpose.msra.mxu0 0
    %498 = vmatprep.subr.bf16.mxu0 0
    %499 = vmatpush1.bf16.xpose.msra.mxu0 0
    %500 = vmatprep.subr.bf16.mxu0 0
    %501 = vmatpush1.bf16.xpose.msra.mxu0 0
    %502 = vmatprep.subr.bf16.mxu0 0
    %503 = vmatpush1.bf16.xpose.msra.mxu0 0
    %504 = vmatprep.subr.bf16.mxu0 0
    %505 = vmatpush1.bf16.xpose.msra.mxu0 0
    %506 = vmatprep.subr.bf16.mxu0 0
    %507 = vmatpush1.bf16.xpose.msra.mxu0 0
    %508 = vmatprep.subr.bf16.mxu0 0
    %509 = vmatpush1.bf16.xpose.msra.mxu0 0
    %510 = vmatprep.subr.bf16.mxu0 0
    %511 = vmatpush1.bf16.xpose.msra.mxu0 0
    %512 = vmatprep.subr.bf16.mxu0 0
    %513 = vmatpush1.bf16.xpose.msra.mxu0 0
    %514 = vmatprep.subr.bf16.mxu0 0
    %515 = vmatpush1.bf16.xpose.msra.mxu0 0
    %516 = vmatprep.subr.bf16.mxu0 0
    %517 = vmatpush1.bf16.xpose.msra.mxu0 0
    %518 = vmatprep.subr.bf16.mxu0 0
    %519 = vmatpush1.bf16.xpose.msra.mxu0 0
    %520 = vmatprep.mubr.bf16.mxu0 0
    %521 = vmatmul.mubr.bf16.gmra.mrb[0].mxu0 %v483
    %v522 = vpop.f32.mrb[0].mxu0
    %v523 = vadd.f32 0.0, %v522
    %v524 = vpop.f32.mrb[0].mxu0
    %v525 = vpop.f32.mrb[0].mxu0
    %v526 = vpop.f32.mrb[0].mxu0
    %527 = vdwg.mxu0
    %v528 = vsel %vm435, %v477, -inf
    %529 = vmax.xlane.f32.xlu0 %v528
    %v530 = vpop.xlane.xlu0 %529
    %v531 = vsel %vm435, %v523, -inf
    %532 = vmax.xlane.f32.xlu0 %v531
    %v533 = vpop.xlane.xlu0 %532
    %v534 = vsub.f32 %v477, %v530
    %v535 = vsub.f32 %v523, %v533
    %v536 = vmul.f32 %v534, 1.442695
    %v537 = vpow.pop %v536
    %v538 = vmul.f32 %v535, 1.442695
    %v539 = vpow.pop %v538
    %v540 = vsel %vm435, %v537, 0.0
    %541 = vadd.xlane.f32.xlu0 %v540
    %v542 = vpop.xlane.xlu0 %541
    %v543 = vsel %vm435, %v539, 0.0
    %544 = vadd.xlane.f32.xlu0 %v543
    %v545 = vpop.xlane.xlu0 %544
    %v546 = vpack.c.bf16 %v537, %v537
    %v547 = vpack.c.bf16 %v539, %v539
    %v549 = vsel %vm435, %v546, 0
    %vm551 = vcmask 1043456
    %v553 = vsel %vm551, %v433, 0
    %555 = vmatprep.subr.bf16.mxu0 0
    %556 = vmatpush1.bf16.msra.mxu0 %v553
    %557 = vmatprep.subr.bf16.mxu0 0
    %558 = vmatpush1.bf16.msra.mxu0 0
    %559 = vmatprep.subr.bf16.mxu0 0
    %560 = vmatpush1.bf16.msra.mxu0 0
    %561 = vmatprep.subr.bf16.mxu0 0
    %562 = vmatpush1.bf16.msra.mxu0 0
    %563 = vmatprep.subr.bf16.mxu0 0
    %564 = vmatpush1.bf16.msra.mxu0 0
    %565 = vmatprep.subr.bf16.mxu0 0
    %566 = vmatpush1.bf16.msra.mxu0 0
    %567 = vmatprep.subr.bf16.mxu0 0
    %568 = vmatpush1.bf16.msra.mxu0 0
    %569 = vmatprep.subr.bf16.mxu0 0
    %570 = vmatpush1.bf16.msra.mxu0 0
    %571 = vmatprep.subr.bf16.mxu0 0
    %572 = vmatpush1.bf16.msra.mxu0 0
    %573 = vmatprep.subr.bf16.mxu0 0
    %574 = vmatpush1.bf16.msra.mxu0 0
    %575 = vmatprep.subr.bf16.mxu0 0
    %576 = vmatpush1.bf16.msra.mxu0 0
    %577 = vmatprep.subr.bf16.mxu0 0
    %578 = vmatpush1.bf16.msra.mxu0 0
    %579 = vmatprep.subr.bf16.mxu0 0
    %580 = vmatpush1.bf16.msra.mxu0 0
    %581 = vmatprep.subr.bf16.mxu0 0
    %582 = vmatpush1.bf16.msra.mxu0 0
    %583 = vmatprep.subr.bf16.mxu0 0
    %584 = vmatpush1.bf16.msra.mxu0 0
    %585 = vmatprep.subr.bf16.mxu0 0
    %586 = vmatpush1.bf16.msra.mxu0 0
    %587 = vmatprep.mubr.bf16.mxu0 0
    %588 = vmatmul.mubr.bf16.gmra.mrb[0].mxu0 %v549
    %v589 = vpop.f32.mrb[0].mxu0
    %v590 = vadd.f32 0.0, %v589
    %v591 = vpop.f32.mrb[0].mxu0
    %v592 = vpop.f32.mrb[0].mxu0
    %v593 = vpop.f32.mrb[0].mxu0
    %594 = vdwg.mxu0
    %v596 = vsel %vm435, %v547, 0
    %v599 = vsel %vm551, %v434, 0
    %601 = vmatprep.subr.bf16.mxu0 0
    %602 = vmatpush1.bf16.msra.mxu0 %v599
    %603 = vmatprep.subr.bf16.mxu0 0
    %604 = vmatpush1.bf16.msra.mxu0 0
    %605 = vmatprep.subr.bf16.mxu0 0
    %606 = vmatpush1.bf16.msra.mxu0 0
    %607 = vmatprep.subr.bf16.mxu0 0
    %608 = vmatpush1.bf16.msra.mxu0 0
    %609 = vmatprep.subr.bf16.mxu0 0
    %610 = vmatpush1.bf16.msra.mxu0 0
    %611 = vmatprep.subr.bf16.mxu0 0
    %612 = vmatpush1.bf16.msra.mxu0 0
    %613 = vmatprep.subr.bf16.mxu0 0
    %614 = vmatpush1.bf16.msra.mxu0 0
    %615 = vmatprep.subr.bf16.mxu0 0
    %616 = vmatpush1.bf16.msra.mxu0 0
    %617 = vmatprep.subr.bf16.mxu0 0
    %618 = vmatpush1.bf16.msra.mxu0 0
    %619 = vmatprep.subr.bf16.mxu0 0
    %620 = vmatpush1.bf16.msra.mxu0 0
    %621 = vmatprep.subr.bf16.mxu0 0
    %622 = vmatpush1.bf16.msra.mxu0 0
    %623 = vmatprep.subr.bf16.mxu0 0
    %624 = vmatpush1.bf16.msra.mxu0 0
    %625 = vmatprep.subr.bf16.mxu0 0
    %626 = vmatpush1.bf16.msra.mxu0 0
    %627 = vmatprep.subr.bf16.mxu0 0
    %628 = vmatpush1.bf16.msra.mxu0 0
    %629 = vmatprep.subr.bf16.mxu0 0
    %630 = vmatpush1.bf16.msra.mxu0 0
    %631 = vmatprep.subr.bf16.mxu0 0
    %632 = vmatpush1.bf16.msra.mxu0 0
    %633 = vmatprep.mubr.bf16.mxu0 0
    %634 = vmatmul.mubr.bf16.gmra.mrb[0].mxu0 %v596
    %v635 = vpop.f32.mrb[0].mxu0
    %v636 = vadd.f32 0.0, %v635
    %v637 = vpop.f32.mrb[0].mxu0
    %v638 = vpop.f32.mrb[0].mxu0
    %v639 = vpop.f32.mrb[0].mxu0
    %640 = vdwg.mxu0
    %v641 = vrcp.pop %v542
    %v642 = vrcp.pop %v545
    %v643 = vmul.f32 %v590, %v641
    %v644 = vmul.f32 %v636, %v642
    %646 = vrot.lane.b32.xlu0 %v429, 120
    %v647 = vpop.permute.xlu0 %646
    %649 = vrot.lane.b32.xlu0 %v431, 120
    %v650 = vpop.permute.xlu0 %649
    %v652 = vsel %vm435, %v647, 0
    %v655 = vsel %vm435, %v650, 0
    %657 = vmatprep.subr.bf16.mxu0 0
    %658 = vmatpush1.bf16.xpose.msra.mxu0 %v655
    %659 = vmatprep.subr.bf16.mxu0 0
    %660 = vmatpush1.bf16.xpose.msra.mxu0 0
    %661 = vmatprep.subr.bf16.mxu0 0
    %662 = vmatpush1.bf16.xpose.msra.mxu0 0
    %663 = vmatprep.subr.bf16.mxu0 0
    %664 = vmatpush1.bf16.xpose.msra.mxu0 0
    %665 = vmatprep.subr.bf16.mxu0 0
    %666 = vmatpush1.bf16.xpose.msra.mxu0 0
    %667 = vmatprep.subr.bf16.mxu0 0
    %668 = vmatpush1.bf16.xpose.msra.mxu0 0
    %669 = vmatprep.subr.bf16.mxu0 0
    %670 = vmatpush1.bf16.xpose.msra.mxu0 0
    %671 = vmatprep.subr.bf16.mxu0 0
    %672 = vmatpush1.bf16.xpose.msra.mxu0 0
    %673 = vmatprep.subr.bf16.mxu0 0
    %674 = vmatpush1.bf16.xpose.msra.mxu0 0
    %675 = vmatprep.subr.bf16.mxu0 0
    %676 = vmatpush1.bf16.xpose.msra.mxu0 0
    %677 = vmatprep.subr.bf16.mxu0 0
    %678 = vmatpush1.bf16.xpose.msra.mxu0 0
    %679 = vmatprep.subr.bf16.mxu0 0
    %680 = vmatpush1.bf16.xpose.msra.mxu0 0
    %681 = vmatprep.subr.bf16.mxu0 0
    %682 = vmatpush1.bf16.xpose.msra.mxu0 0
    %683 = vmatprep.subr.bf16.mxu0 0
    %684 = vmatpush1.bf16.xpose.msra.mxu0 0
    %685 = vmatprep.subr.bf16.mxu0 0
    %686 = vmatpush1.bf16.xpose.msra.mxu0 0
    %687 = vmatprep.subr.bf16.mxu0 0
    %688 = vmatpush1.bf16.xpose.msra.mxu0 0
    %689 = vmatprep.mubr.bf16.mxu0 0
    %690 = vmatmul.mubr.bf16.gmra.mrb[0].mxu0 %v652
    %v691 = vpop.f32.mrb[0].mxu0
    %v692 = vadd.f32 0.0, %v691
    %v693 = vpop.f32.mrb[0].mxu0
    %v694 = vpop.f32.mrb[0].mxu0
    %v695 = vpop.f32.mrb[0].mxu0
    %696 = vdwg.mxu0
    %698 = vrot.lane.b32.xlu0 %v430, 120
    %v699 = vpop.permute.xlu0 %698
    %701 = vrot.lane.b32.xlu0 %v432, 120
    %v702 = vpop.permute.xlu0 %701
    %v704 = vsel %vm435, %v699, 0
    %v707 = vsel %vm435, %v702, 0
    %709 = vmatprep.subr.bf16.mxu0 0
    %710 = vmatpush1.bf16.xpose.msra.mxu0 %v707
    %711 = vmatprep.subr.bf16.mxu0 0
    %712 = vmatpush1.bf16.xpose.msra.mxu0 0
    %713 = vmatprep.subr.bf16.mxu0 0
    %714 = vmatpush1.bf16.xpose.msra.mxu0 0
    %715 = vmatprep.subr.bf16.mxu0 0
    %716 = vmatpush1.bf16.xpose.msra.mxu0 0
    %717 = vmatprep.subr.bf16.mxu0 0
    %718 = vmatpush1.bf16.xpose.msra.mxu0 0
    %719 = vmatprep.subr.bf16.mxu0 0
    %720 = vmatpush1.bf16.xpose.msra.mxu0 0
    %721 = vmatprep.subr.bf16.mxu0 0
    %722 = vmatpush1.bf16.xpose.msra.mxu0 0
    %723 = vmatprep.subr.bf16.mxu0 0
    %724 = vmatpush1.bf16.xpose.msra.mxu0 0
    %725 = vmatprep.subr.bf16.mxu0 0
    %726 = vmatpush1.bf16.xpose.msra.mxu0 0
    %727 = vmatprep.subr.bf16.mxu0 0
    %728 = vmatpush1.bf16.xpose.msra.mxu0 0
    %729 = vmatprep.subr.bf16.mxu0 0
    %730 = vmatpush1.bf16.xpose.msra.mxu0 0
    %731 = vmatprep.subr.bf16.mxu0 0
    %732 = vmatpush1.bf16.xpose.msra.mxu0 0
    %733 = vmatprep.subr.bf16.mxu0 0
    %734 = vmatpush1.bf16.xpose.msra.mxu0 0
    %735 = vmatprep.subr.bf16.mxu0 0
    %736 = vmatpush1.bf16.xpose.msra.mxu0 0
    %737 = vmatprep.subr.bf16.mxu0 0
    %738 = vmatpush1.bf16.xpose.msra.mxu0 0
    %739 = vmatprep.subr.bf16.mxu0 0
    %740 = vmatpush1.bf16.xpose.msra.mxu0 0
    %741 = vmatprep.mubr.bf16.mxu0 0
    %742 = vmatmul.mubr.bf16.gmra.mrb[0].mxu0 %v704
    %v743 = vpop.f32.mrb[0].mxu0
    %v744 = vadd.f32 0.0, %v743
    %v745 = vpop.f32.mrb[0].mxu0
    %v746 = vpop.f32.mrb[0].mxu0
    %v747 = vpop.f32.mrb[0].mxu0
    %748 = vdwg.mxu0
    %v749 = vsel %vm435, %v692, -inf
    %750 = vmax.xlane.f32.xlu0 %v749
    %v751 = vpop.xlane.xlu0 %750
    %v752 = vsel %vm435, %v744, -inf
    %753 = vmax.xlane.f32.xlu0 %v752
    %v754 = vpop.xlane.xlu0 %753
    %v755 = vsub.f32 %v692, %v751
    %v756 = vsub.f32 %v744, %v754
    %v757 = vmul.f32 %v755, 1.442695
    %v758 = vpow.pop %v757
    %v759 = vmul.f32 %v756, 1.442695
    %v760 = vpow.pop %v759
    %v761 = vsel %vm435, %v758, 0.0
    %762 = vadd.xlane.f32.xlu0 %v761
    %v763 = vpop.xlane.xlu0 %762
    %v764 = vsel %vm435, %v760, 0.0
    %765 = vadd.xlane.f32.xlu0 %v764
    %v766 = vpop.xlane.xlu0 %765
    %v767 = vpack.c.bf16 %v758, %v758
    %v768 = vpack.c.bf16 %v760, %v760
    %770 = vrot.lane.b32.xlu0 %v433, 120
    %v771 = vpop.permute.xlu0 %770
    %v773 = vsel %vm435, %v767, 0
    %v776 = vsel %vm551, %v771, 0
    %778 = vmatprep.subr.bf16.mxu0 0
    %779 = vmatpush1.bf16.msra.mxu0 %v776
    %780 = vmatprep.subr.bf16.mxu0 0
    %781 = vmatpush1.bf16.msra.mxu0 0
    %782 = vmatprep.subr.bf16.mxu0 0
    %783 = vmatpush1.bf16.msra.mxu0 0
    %784 = vmatprep.subr.bf16.mxu0 0
    %785 = vmatpush1.bf16.msra.mxu0 0
    %786 = vmatprep.subr.bf16.mxu0 0
    %787 = vmatpush1.bf16.msra.mxu0 0
    %788 = vmatprep.subr.bf16.mxu0 0
    %789 = vmatpush1.bf16.msra.mxu0 0
    %790 = vmatprep.subr.bf16.mxu0 0
    %791 = vmatpush1.bf16.msra.mxu0 0
    %792 = vmatprep.subr.bf16.mxu0 0
    %793 = vmatpush1.bf16.msra.mxu0 0
    %794 = vmatprep.subr.bf16.mxu0 0
    %795 = vmatpush1.bf16.msra.mxu0 0
    %796 = vmatprep.subr.bf16.mxu0 0
    %797 = vmatpush1.bf16.msra.mxu0 0
    %798 = vmatprep.subr.bf16.mxu0 0
    %799 = vmatpush1.bf16.msra.mxu0 0
    %800 = vmatprep.subr.bf16.mxu0 0
    %801 = vmatpush1.bf16.msra.mxu0 0
    %802 = vmatprep.subr.bf16.mxu0 0
    %803 = vmatpush1.bf16.msra.mxu0 0
    %804 = vmatprep.subr.bf16.mxu0 0
    %805 = vmatpush1.bf16.msra.mxu0 0
    %806 = vmatprep.subr.bf16.mxu0 0
    %807 = vmatpush1.bf16.msra.mxu0 0
    %808 = vmatprep.subr.bf16.mxu0 0
    %809 = vmatpush1.bf16.msra.mxu0 0
    %810 = vmatprep.mubr.bf16.mxu0 0
    %811 = vmatmul.mubr.bf16.gmra.mrb[0].mxu0 %v773
    %v812 = vpop.f32.mrb[0].mxu0
    %v813 = vadd.f32 0.0, %v812
    %v814 = vpop.f32.mrb[0].mxu0
    %v815 = vpop.f32.mrb[0].mxu0
    %v816 = vpop.f32.mrb[0].mxu0
    %817 = vdwg.mxu0
    %819 = vrot.lane.b32.xlu0 %v434, 120
    %v820 = vpop.permute.xlu0 %819
    %v822 = vsel %vm435, %v768, 0
    %v825 = vsel %vm551, %v820, 0
    %827 = vmatprep.subr.bf16.mxu0 0
    %828 = vmatpush1.bf16.msra.mxu0 %v825
    %829 = vmatprep.subr.bf16.mxu0 0
    %830 = vmatpush1.bf16.msra.mxu0 0
    %831 = vmatprep.subr.bf16.mxu0 0
    %832 = vmatpush1.bf16.msra.mxu0 0
    %833 = vmatprep.subr.bf16.mxu0 0
    %834 = vmatpush1.bf16.msra.mxu0 0
    %835 = vmatprep.subr.bf16.mxu0 0
    %836 = vmatpush1.bf16.msra.mxu0 0
    %837 = vmatprep.subr.bf16.mxu0 0
    %838 = vmatpush1.bf16.msra.mxu0 0
    %839 = vmatprep.subr.bf16.mxu0 0
    %840 = vmatpush1.bf16.msra.mxu0 0
    %841 = vmatprep.subr.bf16.mxu0 0
    %842 = vmatpush1.bf16.msra.mxu0 0
    %843 = vmatprep.subr.bf16.mxu0 0
    %844 = vmatpush1.bf16.msra.mxu0 0
    %845 = vmatprep.subr.bf16.mxu0 0
    %846 = vmatpush1.bf16.msra.mxu0 0
    %847 = vmatprep.subr.bf16.mxu0 0
    %848 = vmatpush1.bf16.msra.mxu0 0
    %849 = vmatprep.subr.bf16.mxu0 0
    %850 = vmatpush1.bf16.msra.mxu0 0
    %851 = vmatprep.subr.bf16.mxu0 0
    %852 = vmatpush1.bf16.msra.mxu0 0
    %853 = vmatprep.subr.bf16.mxu0 0
    %854 = vmatpush1.bf16.msra.mxu0 0
    %855 = vmatprep.subr.bf16.mxu0 0
    %856 = vmatpush1.bf16.msra.mxu0 0
    %857 = vmatprep.subr.bf16.mxu0 0
    %858 = vmatpush1.bf16.msra.mxu0 0
    %859 = vmatprep.mubr.bf16.mxu0 0
    %860 = vmatmul.mubr.bf16.gmra.mrb[0].mxu0 %v822
    %v861 = vpop.f32.mrb[0].mxu0
    %v862 = vadd.f32 0.0, %v861
    %v863 = vpop.f32.mrb[0].mxu0
    %v864 = vpop.f32.mrb[0].mxu0
    %v865 = vpop.f32.mrb[0].mxu0
    %866 = vdwg.mxu0
    %v867 = vrcp.pop %v763
    %v868 = vrcp.pop %v766
    %v869 = vmul.f32 %v813, %v867
    %v870 = vmul.f32 %v862, %v868
    %871 = vrot.lane.b32.xlu0 %v429, 112
    %v872 = vpop.permute.xlu0 %871
    %873 = vrot.lane.b32.xlu0 %v431, 112
    %v874 = vpop.permute.xlu0 %873
    %v876 = vsel %vm435, %v872, 0
    %v879 = vsel %vm435, %v874, 0
    %881 = vmatprep.subr.bf16.mxu0 0
    %882 = vmatpush1.bf16.xpose.msra.mxu0 %v879
    %883 = vmatprep.subr.bf16.mxu0 0
    %884 = vmatpush1.bf16.xpose.msra.mxu0 0
    %885 = vmatprep.subr.bf16.mxu0 0
    %886 = vmatpush1.bf16.xpose.msra.mxu0 0
    %887 = vmatprep.subr.bf16.mxu0 0
    %888 = vmatpush1.bf16.xpose.msra.mxu0 0
    %889 = vmatprep.subr.bf16.mxu0 0
    %890 = vmatpush1.bf16.xpose.msra.mxu0 0
    %891 = vmatprep.subr.bf16.mxu0 0
    %892 = vmatpush1.bf16.xpose.msra.mxu0 0
    %893 = vmatprep.subr.bf16.mxu0 0
    %894 = vmatpush1.bf16.xpose.msra.mxu0 0
    %895 = vmatprep.subr.bf16.mxu0 0
    %896 = vmatpush1.bf16.xpose.msra.mxu0 0
    %897 = vmatprep.subr.bf16.mxu0 0
    %898 = vmatpush1.bf16.xpose.msra.mxu0 0
    %899 = vmatprep.subr.bf16.mxu0 0
    %900 = vmatpush1.bf16.xpose.msra.mxu0 0
    %901 = vmatprep.subr.bf16.mxu0 0
    %902 = vmatpush1.bf16.xpose.msra.mxu0 0
    %903 = vmatprep.subr.bf16.mxu0 0
    %904 = vmatpush1.bf16.xpose.msra.mxu0 0
    %905 = vmatprep.subr.bf16.mxu0 0
    %906 = vmatpush1.bf16.xpose.msra.mxu0 0
    %907 = vmatprep.subr.bf16.mxu0 0
    %908 = vmatpush1.bf16.xpose.msra.mxu0 0
    %909 = vmatprep.subr.bf16.mxu0 0
    %910 = vmatpush1.bf16.xpose.msra.mxu0 0
    %911 = vmatprep.subr.bf16.mxu0 0
    %912 = vmatpush1.bf16.xpose.msra.mxu0 0
    %913 = vmatprep.mubr.bf16.mxu0 0
    %914 = vmatmul.mubr.bf16.gmra.mrb[0].mxu0 %v876
    %v915 = vpop.f32.mrb[0].mxu0
    %v916 = vadd.f32 0.0, %v915
    %v917 = vpop.f32.mrb[0].mxu0
    %v918 = vpop.f32.mrb[0].mxu0
    %v919 = vpop.f32.mrb[0].mxu0
    %920 = vdwg.mxu0
    %921 = vrot.lane.b32.xlu0 %v430, 112
    %v922 = vpop.permute.xlu0 %921
    %923 = vrot.lane.b32.xlu0 %v432, 112
    %v924 = vpop.permute.xlu0 %923
    %v926 = vsel %vm435, %v922, 0
    %v929 = vsel %vm435, %v924, 0
    %931 = vmatprep.subr.bf16.mxu0 0
    %932 = vmatpush1.bf16.xpose.msra.mxu0 %v929
    %933 = vmatprep.subr.bf16.mxu0 0
    %934 = vmatpush1.bf16.xpose.msra.mxu0 0
    %935 = vmatprep.subr.bf16.mxu0 0
    %936 = vmatpush1.bf16.xpose.msra.mxu0 0
    %937 = vmatprep.subr.bf16.mxu0 0
    %938 = vmatpush1.bf16.xpose.msra.mxu0 0
    %939 = vmatprep.subr.bf16.mxu0 0
    %940 = vmatpush1.bf16.xpose.msra.mxu0 0
    %941 = vmatprep.subr.bf16.mxu0 0
    %942 = vmatpush1.bf16.xpose.msra.mxu0 0
    %943 = vmatprep.subr.bf16.mxu0 0
    %944 = vmatpush1.bf16.xpose.msra.mxu0 0
    %945 = vmatprep.subr.bf16.mxu0 0
    %946 = vmatpush1.bf16.xpose.msra.mxu0 0
    %947 = vmatprep.subr.bf16.mxu0 0
    %948 = vmatpush1.bf16.xpose.msra.mxu0 0
    %949 = vmatprep.subr.bf16.mxu0 0
    %950 = vmatpush1.bf16.xpose.msra.mxu0 0
    %951 = vmatprep.subr.bf16.mxu0 0
    %952 = vmatpush1.bf16.xpose.msra.mxu0 0
    %953 = vmatprep.subr.bf16.mxu0 0
    %954 = vmatpush1.bf16.xpose.msra.mxu0 0
    %955 = vmatprep.subr.bf16.mxu0 0
    %956 = vmatpush1.bf16.xpose.msra.mxu0 0
    %957 = vmatprep.subr.bf16.mxu0 0
    %958 = vmatpush1.bf16.xpose.msra.mxu0 0
    %959 = vmatprep.subr.bf16.mxu0 0
    %960 = vmatpush1.bf16.xpose.msra.mxu0 0
    %961 = vmatprep.subr.bf16.mxu0 0
    %962 = vmatpush1.bf16.xpose.msra.mxu0 0
    %963 = vmatprep.mubr.bf16.mxu0 0
    %964 = vmatmul.mubr.bf16.gmra.mrb[0].mxu0 %v926
    %v965 = vpop.f32.mrb[0].mxu0
    %v966 = vadd.f32 0.0, %v965
    %v967 = vpop.f32.mrb[0].mxu0
    %v968 = vpop.f32.mrb[0].mxu0
    %v969 = vpop.f32.mrb[0].mxu0
    %970 = vdwg.mxu0
    %v971 = vsel %vm435, %v916, -inf
    %972 = vmax.xlane.f32.xlu0 %v971
    %v973 = vpop.xlane.xlu0 %972
    %v974 = vsel %vm435, %v966, -inf
    %975 = vmax.xlane.f32.xlu0 %v974
    %v976 = vpop.xlane.xlu0 %975
    %v977 = vsub.f32 %v916, %v973
    %v978 = vsub.f32 %v966, %v976
    %v979 = vmul.f32 %v977, 1.442695
    %v980 = vpow.pop %v979
    %v981 = vmul.f32 %v978, 1.442695
    %v982 = vpow.pop %v981
    %v983 = vsel %vm435, %v980, 0.0
    %984 = vadd.xlane.f32.xlu0 %v983
    %v985 = vpop.xlane.xlu0 %984
    %v986 = vsel %vm435, %v982, 0.0
    %987 = vadd.xlane.f32.xlu0 %v986
    %v988 = vpop.xlane.xlu0 %987
    %v989 = vpack.c.bf16 %v980, %v980
    %v990 = vpack.c.bf16 %v982, %v982
    %991 = vrot.lane.b32.xlu0 %v433, 112
    %v992 = vpop.permute.xlu0 %991
    %v994 = vsel %vm435, %v989, 0
    %v997 = vsel %vm551, %v992, 0
    %999 = vmatprep.subr.bf16.mxu0 0
    %1000 = vmatpush1.bf16.msra.mxu0 %v997
    %1001 = vmatprep.subr.bf16.mxu0 0
    %1002 = vmatpush1.bf16.msra.mxu0 0
    %1003 = vmatprep.subr.bf16.mxu0 0
    %1004 = vmatpush1.bf16.msra.mxu0 0
    %1005 = vmatprep.subr.bf16.mxu0 0
    %1006 = vmatpush1.bf16.msra.mxu0 0
    %1007 = vmatprep.subr.bf16.mxu0 0
    %1008 = vmatpush1.bf16.msra.mxu0 0
    %1009 = vmatprep.subr.bf16.mxu0 0
    %1010 = vmatpush1.bf16.msra.mxu0 0
    %1011 = vmatprep.subr.bf16.mxu0 0
    %1012 = vmatpush1.bf16.msra.mxu0 0
    %1013 = vmatprep.subr.bf16.mxu0 0
    %1014 = vmatpush1.bf16.msra.mxu0 0
    %1015 = vmatprep.subr.bf16.mxu0 0
    %1016 = vmatpush1.bf16.msra.mxu0 0
    %1017 = vmatprep.subr.bf16.mxu0 0
    %1018 = vmatpush1.bf16.msra.mxu0 0
    %1019 = vmatprep.subr.bf16.mxu0 0
    %1020 = vmatpush1.bf16.msra.mxu0 0
    %1021 = vmatprep.subr.bf16.mxu0 0
    %1022 = vmatpush1.bf16.msra.mxu0 0
    %1023 = vmatprep.subr.bf16.mxu0 0
    %1024 = vmatpush1.bf16.msra.mxu0 0
    %1025 = vmatprep.subr.bf16.mxu0 0
    %1026 = vmatpush1.bf16.msra.mxu0 0
    %1027 = vmatprep.subr.bf16.mxu0 0
    %1028 = vmatpush1.bf16.msra.mxu0 0
    %1029 = vmatprep.subr.bf16.mxu0 0
    %1030 = vmatpush1.bf16.msra.mxu0 0
    %1031 = vmatprep.mubr.bf16.mxu0 0
    %1032 = vmatmul.mubr.bf16.gmra.mrb[0].mxu0 %v994
    %v1033 = vpop.f32.mrb[0].mxu0
    %v1034 = vadd.f32 0.0, %v1033
    %v1035 = vpop.f32.mrb[0].mxu0
    %v1036 = vpop.f32.mrb[0].mxu0
    %v1037 = vpop.f32.mrb[0].mxu0
    %1038 = vdwg.mxu0
    %1039 = vrot.lane.b32.xlu0 %v434, 112
    %v1040 = vpop.permute.xlu0 %1039
    %v1042 = vsel %vm435, %v990, 0
    %v1045 = vsel %vm551, %v1040, 0
    %1047 = vmatprep.subr.bf16.mxu0 0
    %1048 = vmatpush1.bf16.msra.mxu0 %v1045
    %1049 = vmatprep.subr.bf16.mxu0 0
    %1050 = vmatpush1.bf16.msra.mxu0 0
    %1051 = vmatprep.subr.bf16.mxu0 0
    %1052 = vmatpush1.bf16.msra.mxu0 0
    %1053 = vmatprep.subr.bf16.mxu0 0
    %1054 = vmatpush1.bf16.msra.mxu0 0
    %1055 = vmatprep.subr.bf16.mxu0 0
    %1056 = vmatpush1.bf16.msra.mxu0 0
    %1057 = vmatprep.subr.bf16.mxu0 0
    %1058 = vmatpush1.bf16.msra.mxu0 0
    %1059 = vmatprep.subr.bf16.mxu0 0
    %1060 = vmatpush1.bf16.msra.mxu0 0
    %1061 = vmatprep.subr.bf16.mxu0 0
    %1062 = vmatpush1.bf16.msra.mxu0 0
    %1063 = vmatprep.subr.bf16.mxu0 0
    %1064 = vmatpush1.bf16.msra.mxu0 0
    %1065 = vmatprep.subr.bf16.mxu0 0
    %1066 = vmatpush1.bf16.msra.mxu0 0
    %1067 = vmatprep.subr.bf16.mxu0 0
    %1068 = vmatpush1.bf16.msra.mxu0 0
    %1069 = vmatprep.subr.bf16.mxu0 0
    %1070 = vmatpush1.bf16.msra.mxu0 0
    %1071 = vmatprep.subr.bf16.mxu0 0
    %1072 = vmatpush1.bf16.msra.mxu0 0
    %1073 = vmatprep.subr.bf16.mxu0 0
    %1074 = vmatpush1.bf16.msra.mxu0 0
    %1075 = vmatprep.subr.bf16.mxu0 0
    %1076 = vmatpush1.bf16.msra.mxu0 0
    %1077 = vmatprep.subr.bf16.mxu0 0
    %1078 = vmatpush1.bf16.msra.mxu0 0
    %1079 = vmatprep.mubr.bf16.mxu0 0
    %1080 = vmatmul.mubr.bf16.gmra.mrb[0].mxu0 %v1042
    %v1081 = vpop.f32.mrb[0].mxu0
    %v1082 = vadd.f32 0.0, %v1081
    %v1083 = vpop.f32.mrb[0].mxu0
    %v1084 = vpop.f32.mrb[0].mxu0
    %v1085 = vpop.f32.mrb[0].mxu0
    %1086 = vdwg.mxu0
    %v1087 = vrcp.pop %v985
    %v1088 = vrcp.pop %v988
    %v1089 = vmul.f32 %v1034, %v1087
    %v1090 = vmul.f32 %v1082, %v1088
    %1091 = vrot.lane.b32.xlu0 %v429, 104
    %v1092 = vpop.permute.xlu0 %1091
    %1093 = vrot.lane.b32.xlu0 %v431, 104
    %v1094 = vpop.permute.xlu0 %1093
    %v1096 = vsel %vm435, %v1092, 0
    %v1099 = vsel %vm435, %v1094, 0
    %1101 = vmatprep.subr.bf16.mxu0 0
    %1102 = vmatpush1.bf16.xpose.msra.mxu0 %v1099
    %1103 = vmatprep.subr.bf16.mxu0 0
    %1104 = vmatpush1.bf16.xpose.msra.mxu0 0
    %1105 = vmatprep.subr.bf16.mxu0 0
    %1106 = vmatpush1.bf16.xpose.msra.mxu0 0
    %1107 = vmatprep.subr.bf16.mxu0 0
    %1108 = vmatpush1.bf16.xpose.msra.mxu0 0
    %1109 = vmatprep.subr.bf16.mxu0 0
    %1110 = vmatpush1.bf16.xpose.msra.mxu0 0
    %1111 = vmatprep.subr.bf16.mxu0 0
    %1112 = vmatpush1.bf16.xpose.msra.mxu0 0
    %1113 = vmatprep.subr.bf16.mxu0 0
    %1114 = vmatpush1.bf16.xpose.msra.mxu0 0
    %1115 = vmatprep.subr.bf16.mxu0 0
    %1116 = vmatpush1.bf16.xpose.msra.mxu0 0
    %1117 = vmatprep.subr.bf16.mxu0 0
    %1118 = vmatpush1.bf16.xpose.msra.mxu0 0
    %1119 = vmatprep.subr.bf16.mxu0 0
    %1120 = vmatpush1.bf16.xpose.msra.mxu0 0
    %1121 = vmatprep.subr.bf16.mxu0 0
    %1122 = vmatpush1.bf16.xpose.msra.mxu0 0
    %1123 = vmatprep.subr.bf16.mxu0 0
    %1124 = vmatpush1.bf16.xpose.msra.mxu0 0
    %1125 = vmatprep.subr.bf16.mxu0 0
    %1126 = vmatpush1.bf16.xpose.msra.mxu0 0
    %1127 = vmatprep.subr.bf16.mxu0 0
    %1128 = vmatpush1.bf16.xpose.msra.mxu0 0
    %1129 = vmatprep.subr.bf16.mxu0 0
    %1130 = vmatpush1.bf16.xpose.msra.mxu0 0
    %1131 = vmatprep.subr.bf16.mxu0 0
    %1132 = vmatpush1.bf16.xpose.msra.mxu0 0
    %1133 = vmatprep.mubr.bf16.mxu0 0
    %1134 = vmatmul.mubr.bf16.gmra.mrb[0].mxu0 %v1096
    %v1135 = vpop.f32.mrb[0].mxu0
    %v1136 = vadd.f32 0.0, %v1135
    %v1137 = vpop.f32.mrb[0].mxu0
    %v1138 = vpop.f32.mrb[0].mxu0
    %v1139 = vpop.f32.mrb[0].mxu0
    %1140 = vdwg.mxu0
    %1141 = vrot.lane.b32.xlu0 %v430, 104
    %v1142 = vpop.permute.xlu0 %1141
    %1143 = vrot.lane.b32.xlu0 %v432, 104
    %v1144 = vpop.permute.xlu0 %1143
    %v1146 = vsel %vm435, %v1142, 0
    %v1149 = vsel %vm435, %v1144, 0
    %1151 = vmatprep.subr.bf16.mxu0 0
    %1152 = vmatpush1.bf16.xpose.msra.mxu0 %v1149
    %1153 = vmatprep.subr.bf16.mxu0 0
    %1154 = vmatpush1.bf16.xpose.msra.mxu0 0
    %1155 = vmatprep.subr.bf16.mxu0 0
    %1156 = vmatpush1.bf16.xpose.msra.mxu0 0
    %1157 = vmatprep.subr.bf16.mxu0 0
    %1158 = vmatpush1.bf16.xpose.msra.mxu0 0
    %1159 = vmatprep.subr.bf16.mxu0 0
    %1160 = vmatpush1.bf16.xpose.msra.mxu0 0
    %1161 = vmatprep.subr.bf16.mxu0 0
    %1162 = vmatpush1.bf16.xpose.msra.mxu0 0
    %1163 = vmatprep.subr.bf16.mxu0 0
    %1164 = vmatpush1.bf16.xpose.msra.mxu0 0
    %1165 = vmatprep.subr.bf16.mxu0 0
    %1166 = vmatpush1.bf16.xpose.msra.mxu0 0
    %1167 = vmatprep.subr.bf16.mxu0 0
    %1168 = vmatpush1.bf16.xpose.msra.mxu0 0
    %1169 = vmatprep.subr.bf16.mxu0 0
    %1170 = vmatpush1.bf16.xpose.msra.mxu0 0
    %1171 = vmatprep.subr.bf16.mxu0 0
    %1172 = vmatpush1.bf16.xpose.msra.mxu0 0
    %1173 = vmatprep.subr.bf16.mxu0 0
    %1174 = vmatpush1.bf16.xpose.msra.mxu0 0
    %1175 = vmatprep.subr.bf16.mxu0 0
    %1176 = vmatpush1.bf16.xpose.msra.mxu0 0
    %1177 = vmatprep.subr.bf16.mxu0 0
    %1178 = vmatpush1.bf16.xpose.msra.mxu0 0
    %1179 = vmatprep.subr.bf16.mxu0 0
    %1180 = vmatpush1.bf16.xpose.msra.mxu0 0
    %1181 = vmatprep.subr.bf16.mxu0 0
    %1182 = vmatpush1.bf16.xpose.msra.mxu0 0
    %1183 = vmatprep.mubr.bf16.mxu0 0
    %1184 = vmatmul.mubr.bf16.gmra.mrb[0].mxu0 %v1146
    %v1185 = vpop.f32.mrb[0].mxu0
    %v1186 = vadd.f32 0.0, %v1185
    %v1187 = vpop.f32.mrb[0].mxu0
    %v1188 = vpop.f32.mrb[0].mxu0
    %v1189 = vpop.f32.mrb[0].mxu0
    %1190 = vdwg.mxu0
    %v1191 = vsel %vm435, %v1136, -inf
    %1192 = vmax.xlane.f32.xlu0 %v1191
    %v1193 = vpop.xlane.xlu0 %1192
    %v1194 = vsel %vm435, %v1186, -inf
    %1195 = vmax.xlane.f32.xlu0 %v1194
    %v1196 = vpop.xlane.xlu0 %1195
    %v1197 = vsub.f32 %v1136, %v1193
    %v1198 = vsub.f32 %v1186, %v1196
    %v1199 = vmul.f32 %v1197, 1.442695
    %v1200 = vpow.pop %v1199
    %v1201 = vmul.f32 %v1198, 1.442695
    %v1202 = vpow.pop %v1201
    %v1203 = vsel %vm435, %v1200, 0.0
    %1204 = vadd.xlane.f32.xlu0 %v1203
    %v1205 = vpop.xlane.xlu0 %1204
    %v1206 = vsel %vm435, %v1202, 0.0
    %1207 = vadd.xlane.f32.xlu0 %v1206
    %v1208 = vpop.xlane.xlu0 %1207
    %v1209 = vpack.c.bf16 %v1200, %v1200
    %v1210 = vpack.c.bf16 %v1202, %v1202
    %1211 = vrot.lane.b32.xlu0 %v433, 104
    %v1212 = vpop.permute.xlu0 %1211
    %v1214 = vsel %vm435, %v1209, 0
    %v1217 = vsel %vm551, %v1212, 0
    %1219 = vmatprep.subr.bf16.mxu0 0
    %1220 = vmatpush1.bf16.msra.mxu0 %v1217
    %1221 = vmatprep.subr.bf16.mxu0 0
    %1222 = vmatpush1.bf16.msra.mxu0 0
    %1223 = vmatprep.subr.bf16.mxu0 0
    %1224 = vmatpush1.bf16.msra.mxu0 0
    %1225 = vmatprep.subr.bf16.mxu0 0
    %1226 = vmatpush1.bf16.msra.mxu0 0
    %1227 = vmatprep.subr.bf16.mxu0 0
    %1228 = vmatpush1.bf16.msra.mxu0 0
    %1229 = vmatprep.subr.bf16.mxu0 0
    %1230 = vmatpush1.bf16.msra.mxu0 0
    %1231 = vmatprep.subr.bf16.mxu0 0
    %1232 = vmatpush1.bf16.msra.mxu0 0
    %1233 = vmatprep.subr.bf16.mxu0 0
    %1234 = vmatpush1.bf16.msra.mxu0 0
    %1235 = vmatprep.subr.bf16.mxu0 0
    %1236 = vmatpush1.bf16.msra.mxu0 0
    %1237 = vmatprep.subr.bf16.mxu0 0
    %1238 = vmatpush1.bf16.msra.mxu0 0
    %1239 = vmatprep.subr.bf16.mxu0 0
    %1240 = vmatpush1.bf16.msra.mxu0 0
    %1241 = vmatprep.subr.bf16.mxu0 0
    %1242 = vmatpush1.bf16.msra.mxu0 0
    %1243 = vmatprep.subr.bf16.mxu0 0
    %1244 = vmatpush1.bf16.msra.mxu0 0
    %1245 = vmatprep.subr.bf16.mxu0 0
    %1246 = vmatpush1.bf16.msra.mxu0 0
    %1247 = vmatprep.subr.bf16.mxu0 0
    %1248 = vmatpush1.bf16.msra.mxu0 0
    %1249 = vmatprep.subr.bf16.mxu0 0
    %1250 = vmatpush1.bf16.msra.mxu0 0
    %1251 = vmatprep.mubr.bf16.mxu0 0
    %1252 = vmatmul.mubr.bf16.gmra.mrb[0].mxu0 %v1214
    %v1253 = vpop.f32.mrb[0].mxu0
    %v1254 = vadd.f32 0.0, %v1253
    %v1255 = vpop.f32.mrb[0].mxu0
    %v1256 = vpop.f32.mrb[0].mxu0
    %v1257 = vpop.f32.mrb[0].mxu0
    %1258 = vdwg.mxu0
    %1259 = vrot.lane.b32.xlu0 %v434, 104
    %v1260 = vpop.permute.xlu0 %1259
    %v1262 = vsel %vm435, %v1210, 0
    %v1265 = vsel %vm551, %v1260, 0
    %1267 = vmatprep.subr.bf16.mxu0 0
    %1268 = vmatpush1.bf16.msra.mxu0 %v1265
    %1269 = vmatprep.subr.bf16.mxu0 0
    %1270 = vmatpush1.bf16.msra.mxu0 0
    %1271 = vmatprep.subr.bf16.mxu0 0
    %1272 = vmatpush1.bf16.msra.mxu0 0
    %1273 = vmatprep.subr.bf16.mxu0 0
    %1274 = vmatpush1.bf16.msra.mxu0 0
    %1275 = vmatprep.subr.bf16.mxu0 0
    %1276 = vmatpush1.bf16.msra.mxu0 0
    %1277 = vmatprep.subr.bf16.mxu0 0
    %1278 = vmatpush1.bf16.msra.mxu0 0
    %1279 = vmatprep.subr.bf16.mxu0 0
    %1280 = vmatpush1.bf16.msra.mxu0 0
    %1281 = vmatprep.subr.bf16.mxu0 0
    %1282 = vmatpush1.bf16.msra.mxu0 0
    %1283 = vmatprep.subr.bf16.mxu0 0
    %1284 = vmatpush1.bf16.msra.mxu0 0
    %1285 = vmatprep.subr.bf16.mxu0 0
    %1286 = vmatpush1.bf16.msra.mxu0 0
    %1287 = vmatprep.subr.bf16.mxu0 0
    %1288 = vmatpush1.bf16.msra.mxu0 0
    %1289 = vmatprep.subr.bf16.mxu0 0
    %1290 = vmatpush1.bf16.msra.mxu0 0
    %1291 = vmatprep.subr.bf16.mxu0 0
    %1292 = vmatpush1.bf16.msra.mxu0 0
    %1293 = vmatprep.subr.bf16.mxu0 0
    %1294 = vmatpush1.bf16.msra.mxu0 0
    %1295 = vmatprep.subr.bf16.mxu0 0
    %1296 = vmatpush1.bf16.msra.mxu0 0
    %1297 = vmatprep.subr.bf16.mxu0 0
    %1298 = vmatpush1.bf16.msra.mxu0 0
    %1299 = vmatprep.mubr.bf16.mxu0 0
    %1300 = vmatmul.mubr.bf16.gmra.mrb[0].mxu0 %v1262
    %v1301 = vpop.f32.mrb[0].mxu0
    %v1302 = vadd.f32 0.0, %v1301
    %v1303 = vpop.f32.mrb[0].mxu0
    %v1304 = vpop.f32.mrb[0].mxu0
    %v1305 = vpop.f32.mrb[0].mxu0
    %1306 = vdwg.mxu0
    %v1307 = vrcp.pop %v1205
    %v1308 = vrcp.pop %v1208
    %v1309 = vmul.f32 %v1254, %v1307
    %v1310 = vmul.f32 %v1302, %v1308
    %1313 = vrot.lane.b32.xlu0 %v869, 8
    %v1314 = vpop.permute.xlu0 %1313
    %1315 = vrot.lane.b32.xlu0 %v870, 8
    %v1316 = vpop.permute.xlu0 %1315
    %1321 = vrot.lane.b32.xlu0 %v1089, 16
    %v1322 = vpop.permute.xlu0 %1321
    %1323 = vrot.lane.b32.xlu0 %v1090, 16
    %v1324 = vpop.permute.xlu0 %1323
    %1329 = vrot.lane.b32.xlu0 %v1309, 24
    %v1330 = vpop.permute.xlu0 %1329
    %1331 = vrot.lane.b32.xlu0 %v1310, 24
    %v1332 = vpop.permute.xlu0 %1331
    %v1335 = vsel %vm435, %v643, %v1314
    %v1336 = vsel %vm435, %v644, %v1316
    %vm1337 = vcmask 130048
    %v1338 = vsel %vm1337, %v1335, %v1322
    %v1339 = vsel %vm1337, %v1336, %v1324
    %vm1340 = vcmask 195584
    %v1341 = vsel %vm1340, %v1338, %v1330
    %v1342 = vsel %vm1340, %v1339, %v1332
    %v1343 = vpack.c.bf16 %v1342, %v1341
    %v1344 = vld [vmem:[%s6] sm:$0xf]
    %v1345 = vld [vmem:[%s6 + $0x4] sm:$0xf]
    %v1346 = vld [vmem:[%s6 + $0x8] sm:$0xf]
    %v1347 = vld [vmem:[%s6 + $0xc] sm:$0xf]
    %v1348 = vld [vmem:[%s7] sm:$0x1]
    %v1350 = vlaneseq
    %v1351 = vshrl.u32 %v1350, 7
    %v1352 = vsub.s32 0, %v1351
    %v1353 = vrot.slane %v1348, %v1352
    %v1359 = vunpack.c.l.b16 %v1344
    %v1360 = vunpack.c.l.b16 %v1345
    %v1361 = vunpack.c.l.b16 %v1346
    %v1362 = vunpack.c.l.b16 %v1347
    %v1363 = vpack.c.b16 %v1360, %v1359
    %v1364 = vpack.c.b16 %v1362, %v1361
    %vm1367 = vcmask 261120
    %v1369 = vsel %vm1367, %v1343, 0
    %1371 = vmatprep.subr.bf16.mxu0 0
    %1372 = vmatpush1.bf16.msra.mxu0 %v1363
    %1373 = vmatprep.subr.bf16.mxu0 0
    %1374 = vmatpush1.bf16.msra.mxu0 %v1364
    %1375 = vmatprep.subr.bf16.mxu0 0
    %1376 = vmatpush1.bf16.msra.mxu0 0
    %1377 = vmatprep.subr.bf16.mxu0 0
    %1378 = vmatpush1.bf16.msra.mxu0 0
    %1379 = vmatprep.subr.bf16.mxu0 0
    %1380 = vmatpush1.bf16.msra.mxu0 0
    %1381 = vmatprep.subr.bf16.mxu0 0
    %1382 = vmatpush1.bf16.msra.mxu0 0
    %1383 = vmatprep.subr.bf16.mxu0 0
    %1384 = vmatpush1.bf16.msra.mxu0 0
    %1385 = vmatprep.subr.bf16.mxu0 0
    %1386 = vmatpush1.bf16.msra.mxu0 0
    %1387 = vmatprep.subr.bf16.mxu0 0
    %1388 = vmatpush1.bf16.msra.mxu0 0
    %1389 = vmatprep.subr.bf16.mxu0 0
    %1390 = vmatpush1.bf16.msra.mxu0 0
    %1391 = vmatprep.subr.bf16.mxu0 0
    %1392 = vmatpush1.bf16.msra.mxu0 0
    %1393 = vmatprep.subr.bf16.mxu0 0
    %1394 = vmatpush1.bf16.msra.mxu0 0
    %1395 = vmatprep.subr.bf16.mxu0 0
    %1396 = vmatpush1.bf16.msra.mxu0 0
    %1397 = vmatprep.subr.bf16.mxu0 0
    %1398 = vmatpush1.bf16.msra.mxu0 0
    %1399 = vmatprep.subr.bf16.mxu0 0
    %1400 = vmatpush1.bf16.msra.mxu0 0
    %1401 = vmatprep.subr.bf16.mxu0 0
    %1402 = vmatpush1.bf16.msra.mxu0 0
    %1403 = vmatprep.mubr.bf16.mxu0 0
    %1404 = vmatmul.mubr.bf16.gmra.mrb[0].mxu0 %v1369
    %v1405 = vpop.f32.mrb[0].mxu0
    %v1406 = vadd.f32 %v1353, %v1405
    %v1407 = vpop.f32.mrb[0].mxu0
    %v1408 = vpop.f32.mrb[0].mxu0
    %v1409 = vadd.f32 %v1353, %v1408
    %v1410 = vpop.f32.mrb[0].mxu0
    %1411 = vdwg.mxu0
    %v1412 = vadd.f32 %v118, %v1406
    %v1413 = vadd.f32 %v119, %v1409
    %v1414 = vld [vmem:[%s8] sm:$0x1]
    %v1415 = vld [vmem:[%s9] sm:$0x1]
    %1416 = vadd.xlane.f32.xlu0 %v1412
    %v1417 = vpop.xlane.xlu0 %1416
    %1418 = vadd.xlane.f32.xlu0 %v1413
    %v1419 = vpop.xlane.xlu0 %1418
    %v1420 = vmul.f32 %v1417, %v126
    %v1421 = vmul.f32 %v1419, %v126
    %v1422 = vsub.f32 %v1412, %v1420
    %v1423 = vsub.f32 %v1413, %v1421
    %v1424 = vmul.f32 %v1422, %v1422
    %v1425 = vmul.f32 %v1423, %v1423
    %1426 = vadd.xlane.f32.xlu0 %v1424
    %v1427 = vpop.xlane.xlu0 %1426
    %1428 = vadd.xlane.f32.xlu0 %v1425
    %v1429 = vpop.xlane.xlu0 %1428
    %v1430 = vmul.f32 %v1420, %v1420
    %v1431 = vmul.f32 %v1421, %v1421
    %v1432 = vmul.f32 %v1430, 96.0
    %v1433 = vmul.f32 %v1431, 96.0
    %v1434 = vsub.f32 %v1427, %v1432
    %v1435 = vsub.f32 %v1429, %v1433
    %v1436 = vmul.f32 %v1434, %v126
    %v1437 = vmul.f32 %v1435, %v126
    %v1438 = vadd.f32 %v1436, 1e-06
    %v1439 = vadd.f32 %v1437, 1e-06
    %v1440 = vrsqrt.pop %v1438
    %v1441 = vrsqrt.pop %v1439
    %v1442 = vmul.f32 %v1422, %v1440
    %v1443 = vmul.f32 %v1423, %v1441
    %v1445 = vlaneseq
    %v1446 = vshrl.u32 %v1445, 7
    %v1447 = vsub.s32 0, %v1446
    %v1448 = vrot.slane %v1414, %v1447
    %v1450 = vmul.f32 %v1442, %v1448
    %v1451 = vmul.f32 %v1443, %v1448
    %v1453 = vlaneseq
    %v1454 = vshrl.u32 %v1453, 7
    %v1455 = vsub.s32 0, %v1454
    %v1456 = vrot.slane %v1415, %v1455
    %v1458 = vadd.f32 %v1450, %v1456
    %v1459 = vadd.f32 %v1451, %v1456
    %v1460 = vpack.c.bf16 %v1459, %v1458
    %v1461 = vld [vmem:[#allocation8] sm:$0xf]
    %v1462 = vld [vmem:[#allocation8 + $0x4] sm:$0xf]
    %v1463 = vld [vmem:[#allocation8 + $0x8] sm:$0xf]
    %v1464 = vld [vmem:[#allocation8 + $0xc] sm:$0xf]
    %v1465 = vld [vmem:[#allocation8 + $0x10] sm:$0xf]
    %v1466 = vld [vmem:[#allocation8 + $0x14] sm:$0xf]
    %v1467 = vld [vmem:[#allocation8 + $0x18] sm:$0xf]
    %v1468 = vld [vmem:[#allocation8 + $0x1c] sm:$0xf]
    %v1469 = vld [vmem:[#allocation8 + $0x20] sm:$0xf]
    %v1470 = vld [vmem:[#allocation8 + $0x24] sm:$0xf]
    %v1471 = vld [vmem:[#allocation8 + $0x28] sm:$0xf]
    %v1472 = vld [vmem:[#allocation8 + $0x2c] sm:$0xf]
    %v1473 = vld [vmem:[#allocation8 + $0x30] sm:$0xf]
    %v1474 = vld [vmem:[#allocation8 + $0x34] sm:$0xf]
    %v1475 = vld [vmem:[#allocation8 + $0x38] sm:$0xf]
    %v1476 = vld [vmem:[#allocation8 + $0x3c] sm:$0xf]
    %v1477 = vld [vmem:[%s11] sm:$0x1]
    %v1479 = vlaneseq
    %v1480 = vshrl.u32 %v1479, 7
    %v1481 = vsub.s32 0, %v1480
    %v1482 = vrot.slane %v1477, %v1481
    %v1500 = vunpack.c.l.b16 %v1461
    %v1501 = vunpack.c.l.b16 %v1462
    %v1502 = vunpack.c.l.b16 %v1463
    %v1503 = vunpack.c.l.b16 %v1464
    %v1504 = vunpack.c.l.b16 %v1465
    %v1505 = vunpack.c.l.b16 %v1466
    %v1506 = vunpack.c.l.b16 %v1467
    %v1507 = vunpack.c.l.b16 %v1468
    %v1508 = vunpack.c.l.b16 %v1469
    %v1509 = vunpack.c.l.b16 %v1470
    %v1510 = vunpack.c.l.b16 %v1471
    %v1511 = vunpack.c.l.b16 %v1472
    %v1512 = vunpack.c.l.b16 %v1473
    %v1513 = vunpack.c.l.b16 %v1474
    %v1514 = vunpack.c.l.b16 %v1475
    %v1515 = vunpack.c.l.b16 %v1476
    %v1516 = vpack.c.b16 %v1501, %v1500
    %v1517 = vpack.c.b16 %v1503, %v1502
    %v1518 = vpack.c.b16 %v1505, %v1504
    %v1519 = vpack.c.b16 %v1507, %v1506
    %v1520 = vpack.c.b16 %v1509, %v1508
    %v1521 = vpack.c.b16 %v1511, %v1510
    %v1522 = vpack.c.b16 %v1513, %v1512
    %v1523 = vpack.c.b16 %v1515, %v1514
    %1532 = vmatprep.subr.bf16.mxu0 0
    %1533 = vmatpush1.bf16.msra.mxu0 %v1516
    %1534 = vmatprep.subr.bf16.mxu0 0
    %1535 = vmatpush1.bf16.msra.mxu0 %v1517
    %1536 = vmatprep.subr.bf16.mxu0 0
    %1537 = vmatpush1.bf16.msra.mxu0 %v1518
    %1538 = vmatprep.subr.bf16.mxu0 0
    %1539 = vmatpush1.bf16.msra.mxu0 %v1519
    %1540 = vmatprep.subr.bf16.mxu0 0
    %1541 = vmatpush1.bf16.msra.mxu0 %v1520
    %1542 = vmatprep.subr.bf16.mxu0 0
    %1543 = vmatpush1.bf16.msra.mxu0 %v1521
    %1544 = vmatprep.subr.bf16.mxu0 0
    %1545 = vmatpush1.bf16.msra.mxu0 %v1522
    %1546 = vmatprep.subr.bf16.mxu0 0
    %1547 = vmatpush1.bf16.msra.mxu0 %v1523
    %1548 = vmatprep.subr.bf16.mxu0 0
    %1549 = vmatpush1.bf16.msra.mxu0 0
    %1550 = vmatprep.subr.bf16.mxu0 0
    %1551 = vmatpush1.bf16.msra.mxu0 0
    %1552 = vmatprep.subr.bf16.mxu0 0
    %1553 = vmatpush1.bf16.msra.mxu0 0
    %1554 = vmatprep.subr.bf16.mxu0 0
    %1555 = vmatpush1.bf16.msra.mxu0 0
    %1556 = vmatprep.subr.bf16.mxu0 0
    %1557 = vmatpush1.bf16.msra.mxu0 0
    %1558 = vmatprep.subr.bf16.mxu0 0
    %1559 = vmatpush1.bf16.msra.mxu0 0
    %1560 = vmatprep.subr.bf16.mxu0 0
    %1561 = vmatpush1.bf16.msra.mxu0 0
    %1562 = vmatprep.subr.bf16.mxu0 0
    %1563 = vmatpush1.bf16.msra.mxu0 0
    %1564 = vmatprep.mubr.bf16.mxu0 0
    %1565 = vmatmul.mubr.bf16.gmra.mrb[0].mxu0 %v1460
    %v1566 = vpop.f32.mrb[0].mxu0
    %v1567 = vadd.f32 %v1482, %v1566
    %v1568 = vpop.f32.mrb[0].mxu0
    %v1569 = vpop.f32.mrb[0].mxu0
    %v1570 = vadd.f32 %v1482, %v1569
    %v1571 = vpop.f32.mrb[0].mxu0
    %1572 = vdwg.mxu0
    %v1573 = vmul.f32 %v1567, 0.5
    %v1574 = vmul.f32 %v1570, 0.5
    %v1575 = vmul.f32 %v1567, 0.70710677
    %v1576 = vmul.f32 %v1570, 0.70710677
    %vm1577 = vcmp.ge.f32.partialorder %v1575, 0.0
    %vm1578 = vcmp.ge.f32.partialorder %v1576, 0.0
    %v1579 = vsel %vm1577, 1.0, -1.0
    %v1580 = vsel %vm1578, 1.0, -1.0
    %v1581 = vand.u32 2147483647, %v1575
    %v1582 = vand.u32 2147483647, %v1576
    %v1583 = vmul.f32 %v1581, 0.3275911
    %v1584 = vmul.f32 %v1582, 0.3275911
    %v1585 = vadd.f32 %v1583, 1.0
    %v1586 = vadd.f32 %v1584, 1.0
    %v1587 = vrcp.pop %v1585
    %v1588 = vmul.f32 1.0, %v1587
    %v1589 = vrcp.pop %v1586
    %v1590 = vmul.f32 1.0, %v1589
    %v1591 = vmul.f32 %v1588, 1.0614054
    %v1592 = vmul.f32 %v1590, 1.0614054
    %v1593 = vadd.f32 %v1591, -1.4531521
    %v1594 = vadd.f32 %v1592, -1.4531521
    %v1595 = vmul.f32 %v1593, %v1588
    %v1596 = vmul.f32 %v1594, %v1590
    %v1597 = vadd.f32 %v1595, 1.4214138
    %v1598 = vadd.f32 %v1596, 1.4214138
    %v1599 = vmul.f32 %v1597, %v1588
    %v1600 = vmul.f32 %v1598, %v1590
    %v1601 = vadd.f32 %v1599, -0.28449672
    %v1602 = vadd.f32 %v1600, -0.28449672
    %v1603 = vmul.f32 %v1601, %v1588
    %v1604 = vmul.f32 %v1602, %v1590
    %v1605 = vadd.f32 %v1603, 0.2548296
    %v1606 = vadd.f32 %v1604, 0.2548296
    %v1607 = vmul.f32 %v1605, %v1588
    %v1608 = vmul.f32 %v1606, %v1590
    %v1609 = vsub.f32 0.0, %v1581
    %v1610 = vsub.f32 0.0, %v1582
    %v1611 = vmul.f32 %v1609, %v1581
    %v1612 = vmul.f32 %v1610, %v1582
    %v1613 = vmul.f32 %v1611, 1.442695
    %v1614 = vpow.pop %v1613
    %v1615 = vmul.f32 %v1612, 1.442695
    %v1616 = vpow.pop %v1615
    %v1617 = vmul.f32 %v1607, %v1614
    %v1618 = vmul.f32 %v1608, %v1616
    %v1619 = vsub.f32 1.0, %v1617
    %v1620 = vsub.f32 1.0, %v1618
    %v1621 = vmul.f32 %v1579, %v1619
    %v1622 = vmul.f32 %v1580, %v1620
    %v1623 = vadd.f32 %v1621, 1.0
    %v1624 = vadd.f32 %v1622, 1.0
    %v1625 = vmul.f32 %v1573, %v1623
    %v1626 = vmul.f32 %v1574, %v1624
    %v1627 = vpack.c.bf16 %v1626, %v1625
    %v1628 = vld [vmem:[#allocation10] sm:$0xf]
    %v1629 = vld [vmem:[#allocation10 + $0x4] sm:$0xf]
    %v1630 = vld [vmem:[#allocation10 + $0x8] sm:$0xf]
    %v1631 = vld [vmem:[#allocation10 + $0xc] sm:$0xf]
    %v1632 = vld [vmem:[#allocation10 + $0x10] sm:$0xf]
    %v1633 = vld [vmem:[#allocation10 + $0x14] sm:$0xf]
    %v1634 = vld [vmem:[#allocation10 + $0x18] sm:$0xf]
    %v1635 = vld [vmem:[#allocation10 + $0x1c] sm:$0xf]
    %v1636 = vld [vmem:[#allocation10 + $0x20] sm:$0xf]
    %v1637 = vld [vmem:[#allocation10 + $0x24] sm:$0xf]
    %v1638 = vld [vmem:[#allocation10 + $0x28] sm:$0xf]
    %v1639 = vld [vmem:[#allocation10 + $0x2c] sm:$0xf]
    %v1640 = vld [vmem:[#allocation10 + $0x30] sm:$0xf]
    %v1641 = vld [vmem:[#allocation10 + $0x34] sm:$0xf]
    %v1642 = vld [vmem:[#allocation10 + $0x38] sm:$0xf]
    %v1643 = vld [vmem:[#allocation10 + $0x3c] sm:$0xf]
    %v1644 = vld [vmem:[%s13] sm:$0x1]
    %v1646 = vlaneseq
    %v1647 = vshrl.u32 %v1646, 7
    %v1648 = vsub.s32 0, %v1647
    %v1649 = vrot.slane %v1644, %v1648
    %v1667 = vunpack.c.l.b16 %v1628
    %v1668 = vunpack.c.l.b16 %v1629
    %v1669 = vunpack.c.l.b16 %v1630
    %v1670 = vunpack.c.l.b16 %v1631
    %v1671 = vunpack.c.l.b16 %v1632
    %v1672 = vunpack.c.l.b16 %v1633
    %v1673 = vunpack.c.l.b16 %v1634
    %v1674 = vunpack.c.l.b16 %v1635
    %v1675 = vunpack.c.l.b16 %v1636
    %v1676 = vunpack.c.l.b16 %v1637
    %v1677 = vunpack.c.l.b16 %v1638
    %v1678 = vunpack.c.l.b16 %v1639
    %v1679 = vunpack.c.l.b16 %v1640
    %v1680 = vunpack.c.l.b16 %v1641
    %v1681 = vunpack.c.l.b16 %v1642
    %v1682 = vunpack.c.l.b16 %v1643
    %v1683 = vpack.c.b16 %v1668, %v1667
    %v1684 = vpack.c.b16 %v1670, %v1669
    %v1685 = vpack.c.b16 %v1672, %v1671
    %v1686 = vpack.c.b16 %v1674, %v1673
    %v1687 = vpack.c.b16 %v1676, %v1675
    %v1688 = vpack.c.b16 %v1678, %v1677
    %v1689 = vpack.c.b16 %v1680, %v1679
    %v1690 = vpack.c.b16 %v1682, %v1681
    %1699 = vmatprep.subr.bf16.mxu0 0
    %1700 = vmatpush1.bf16.msra.mxu0 %v1683
    %1701 = vmatprep.subr.bf16.mxu0 0
    %1702 = vmatpush1.bf16.msra.mxu0 %v1684
    %1703 = vmatprep.subr.bf16.mxu0 0
    %1704 = vmatpush1.bf16.msra.mxu0 %v1685
    %1705 = vmatprep.subr.bf16.mxu0 0
    %1706 = vmatpush1.bf16.msra.mxu0 %v1686
    %1707 = vmatprep.subr.bf16.mxu0 0
    %1708 = vmatpush1.bf16.msra.mxu0 %v1687
    %1709 = vmatprep.subr.bf16.mxu0 0
    %1710 = vmatpush1.bf16.msra.mxu0 %v1688
    %1711 = vmatprep.subr.bf16.mxu0 0
    %1712 = vmatpush1.bf16.msra.mxu0 %v1689
    %1713 = vmatprep.subr.bf16.mxu0 0
    %1714 = vmatpush1.bf16.msra.mxu0 %v1690
    %1715 = vmatprep.subr.bf16.mxu0 0
    %1716 = vmatpush1.bf16.msra.mxu0 0
    %1717 = vmatprep.subr.bf16.mxu0 0
    %1718 = vmatpush1.bf16.msra.mxu0 0
    %1719 = vmatprep.subr.bf16.mxu0 0
    %1720 = vmatpush1.bf16.msra.mxu0 0
    %1721 = vmatprep.subr.bf16.mxu0 0
    %1722 = vmatpush1.bf16.msra.mxu0 0
    %1723 = vmatprep.subr.bf16.mxu0 0
    %1724 = vmatpush1.bf16.msra.mxu0 0
    %1725 = vmatprep.subr.bf16.mxu0 0
    %1726 = vmatpush1.bf16.msra.mxu0 0
    %1727 = vmatprep.subr.bf16.mxu0 0
    %1728 = vmatpush1.bf16.msra.mxu0 0
    %1729 = vmatprep.subr.bf16.mxu0 0
    %1730 = vmatpush1.bf16.msra.mxu0 0
    %1731 = vmatprep.mubr.bf16.mxu0 0
    %1732 = vmatmul.mubr.bf16.gmra.mrb[0].mxu0 %v1627
    %v1733 = vpop.f32.mrb[0].mxu0
    %v1734 = vadd.f32 %v1649, %v1733
    %v1735 = vpop.f32.mrb[0].mxu0
    %v1736 = vpop.f32.mrb[0].mxu0
    %v1737 = vadd.f32 %v1649, %v1736
    %v1738 = vpop.f32.mrb[0].mxu0
    %1739 = vdwg.mxu0
    %v1740 = vadd.f32 %v1412, %v1734
    %v1741 = vadd.f32 %v1413, %v1737
    %1742 = vst [vmem:[#allocation11] sm:$0xff] %v1740
    %1743 = vst [vmem:[#allocation11 + $0x8] sm:$0xff] %v1741
    // Predicated region
    $region78: #{tpu_custom_call.1} parent=1 // pred_check
      _
    $region79: #{tpu_custom_call.1} parent=1 // pred_check_branch
      %1745 = sbr.rel (0) target = $region81
    $region80: #{tpu_custom_call.1} parent=1 // pred_region
      %s1747 = ssub.s32 256, 256
      %1748 = vsyncadd [#allocation4], %s1747
      %s1749 = sshll.u32 [#allocation11], 4
      %s1750 = int_to_ptr.vmem [resolvable:$true] %s1749
      %1755 = dma.vmem_to_hbm [thread:$0]  %s1750, 256, %s14, [#allocation4], 128, 128, 8
    $region81: #{tpu_custom_call.1} parent=1 // pred_fallthru
      _
    // Predicated region
    $region82: #{tpu_custom_call.1} parent=1 // pred_check
      _
    $region83: #{tpu_custom_call.1} parent=1 // pred_check_branch
      %1757 = sbr.rel (0) target = $region85
    $region84: #{tpu_custom_call.1} parent=1 // pred_region
      %1758 = dma.done [#allocation4], 256
    $region85: #{tpu_custom_call.1} parent=1 // pred_fallthru
      _
    %1759 = vsyncpa [#allocation3], 1
    %1760 = vsyncpa [#allocation6], 1
    %1761 = vsyncpa [#allocation9], 1
    %1762 = vsyncpa [#allocation4], 1

</llo_original>
